<compile_context>
chip_gen: v7x
topology: tpu7x:2x2x1
jax: 0.10.0
libtpu: 0.0.40
codegen_flags: <defaults>
</compile_context>

<pallas_src>
import math

import jax
import jax.numpy as jnp
from jax.experimental import pallas as pl
from jax.experimental.pallas import tpu as pltpu

W0 = 30.0   # Sine.W0 initial value
C = 6.0     # Siren.C


def siren_kernel(xT_ref, w_ref, b_ref, o_ref):
    # xT_ref: (in_dim, tile_m)   -- x tile, pre-transposed (batch on lanes)
    # w_ref : (out_dim, in_dim)  -- torch-style Linear weight, resident
    # b_ref : (out_dim, 1)       -- bias, resident
    # o_ref : (out_dim, tile_m)  -- lane-dense output tile
    x = xT_ref[...].astype(jnp.float32)
    w = w_ref[...].astype(jnp.float32)
    in_dim = w.shape[1]

    if in_dim <= 8:
        # K is tiny: a handful of broadcast FMAs on the VPU.  Keeps the MXU
        # (and its push/pop latency) entirely out of the critical path.
        acc = w[:, 0:1] * x[0:1, :]
        for k in range(1, in_dim):
            acc = acc + w[:, k:k + 1] * x[k:k + 1, :]
    else:
        acc = jnp.dot(w, x, preferred_element_type=jnp.float32)

    y = acc + b_ref[...].astype(jnp.float32)          # bias broadcasts over lanes
    o_ref[...] = jnp.sin(W0 * y).astype(o_ref.dtype)  # Sine activation


def siren_forward(x, weight, bias, *, tile_m=512, out_dtype=None):
    """Siren forward pass.

    x:      (N, in_dim)        batch of coordinates
    weight: (out_dim, in_dim)  torch.nn.Linear weight
    bias:   (out_dim,)         torch.nn.Linear bias
    returns (N, out_dim) = sin(W0 * (x @ W^T + b))
    """
    N, in_dim = x.shape
    out_dim = weight.shape[0]
    out_dtype = x.dtype if out_dtype is None else out_dtype
    assert tile_m % 128 == 0, "tile_m must be a multiple of 128 (lane width)"

    num_tiles = pl.cdiv(N, tile_m)
    n_pad = num_tiles * tile_m

    # Layout plumbing (done once in XLA): put the batch axis on lanes and pad
    # the ragged last tile.
    x_t = x.T                                   # (in_dim, N)
    if n_pad != N:
        x_t = jnp.pad(x_t, ((0, 0), (0, n_pad - N)))
    b2 = bias.reshape(out_dim, 1)               # (out_dim, 1)

    out_t = pl.pallas_call(
        siren_kernel,
        out_shape=jax.ShapeDtypeStruct((out_dim, n_pad), out_dtype),
        grid_spec=pltpu.PrefetchScalarGridSpec(
            num_scalar_prefetch=0,
            grid=(num_tiles,),
            in_specs=[
                # x^T tile: (in_dim, tile_m); in_dim == full dim, tile_m % 128 == 0
                pl.BlockSpec((in_dim, tile_m), lambda i: (0, i)),
                # weight / bias: constant index_map -> stay resident across steps
                pl.BlockSpec((out_dim, in_dim), lambda i: (0, 0)),
                pl.BlockSpec((out_dim, 1), lambda i: (0, 0)),
            ],
            out_specs=pl.BlockSpec((out_dim, tile_m), lambda i: (0, i)),
        ),
        compiler_params=pltpu.CompilerParams(
            dimension_semantics=("parallel",)),   # shards across v7x's 2 TCs
    )(x_t, weight, b2)

    # Back to the module's (N, out_dim) convention; drop padding.
    return out_t[:, :N].T


if __name__ == "__main__":
    in_dim, out_dim = 3, 32
    key = jax.random.PRNGKey(0)
    kx, kw, kb, kx2 = jax.random.split(key, 4)

    # Deterministic "uniform siren" init: std = sqrt(C / in_dim) / W0
    std = math.sqrt(C / in_dim) / W0
    weight = jax.random.uniform(kw, (out_dim, in_dim), jnp.float32,
                                minval=-std, maxval=std)
    bias = jax.random.uniform(kb, (out_dim,), jnp.float32,
                              minval=-std, maxval=std)

    def ref_fn(xv):
        return jnp.sin(W0 * (xv @ weight.T + bias))

    # Case 1: N a multiple of tile_m (grid of 4 -> exercises megacore sharding).
    N1 = 2048
    x1 = jax.random.uniform(kx, (N1, in_dim), jnp.float32, minval=-1.0, maxval=1.0)
    out1 = jax.block_until_ready(siren_forward(x1, weight, bias, tile_m=512))
    assert out1.shape == (N1, out_dim)
    assert jnp.allclose(out1, ref_fn(x1), atol=1e-5, rtol=1e-5)

    # Case 2: ragged N (not a multiple of tile_m) -> exercises cdiv + padding.
    N2 = 1000
    x2 = jax.random.uniform(kx2, (N2, in_dim), jnp.float32, minval=-1.0, maxval=1.0)
    out2 = jax.block_until_ready(siren_forward(x2, weight, bias, tile_m=512))
    assert out2.shape == (N2, out_dim)
    assert jnp.allclose(out2, ref_fn(x2), atol=1e-5, rtol=1e-5)

    # TODO(synk): for a full multi-layer Siren MLP, fuse subsequent
    # Linear+sin layers into one pallas_call to keep activations in VMEM.

    print("KERNEL_OK")
</pallas_src>

<mosaic_0001>
module attributes {stable_mosaic.version = 11 : i64} {
  func.func @siren_kernel(%arg0: i32, %arg1: memref<3x512xf32, #tpu.memory_space<vmem>>, %arg2: memref<32x3xf32, #tpu.memory_space<vmem>>, %arg3: memref<32x1xf32, #tpu.memory_space<vmem>>, %arg4: memref<32x512xf32, #tpu.memory_space<vmem>>) attributes {dimension_semantics = [#tpu.dimension_semantics<parallel>], iteration_bounds = array<i64: 4>, scalar_prefetch = 0 : i64, scratch_operands = 0 : i64, tpu.core_type = #tpu.core_type<tc>, window_params = [{transform_indices = @transform_0, window_bounds = array<i64: 3, 512>}, {pipeline_mode = #tpu.pipeline_mode<synchronous>, transform_indices = @transform_1, window_bounds = array<i64: 32, 3>}, {pipeline_mode = #tpu.pipeline_mode<synchronous>, transform_indices = @transform_2, window_bounds = array<i64: 32, 1>}, {transform_indices = @transform_3, window_bounds = array<i64: 32, 512>}]} {
    %c0 = arith.constant 0 : index
    %c0_0 = arith.constant 0 : index
    %0 = vector.load %arg1[%c0, %c0_0] : memref<3x512xf32, #tpu.memory_space<vmem>>, vector<3x512xf32>
    %c0_1 = arith.constant 0 : index
    %c0_2 = arith.constant 0 : index
    %1 = vector.load %arg2[%c0_1, %c0_2] : memref<32x3xf32, #tpu.memory_space<vmem>>, vector<32x3xf32>
    %2 = vector.extract_strided_slice %1 {offsets = [0, 0], sizes = [32, 1], strides = [1, 1]} : vector<32x3xf32> to vector<32x1xf32>
    %3 = vector.extract_strided_slice %0 {offsets = [0, 0], sizes = [1, 512], strides = [1, 1]} : vector<3x512xf32> to vector<1x512xf32>
    %4 = vector.broadcast %2 : vector<32x1xf32> to vector<32x512xf32>
    %5 = vector.broadcast %3 : vector<1x512xf32> to vector<32x512xf32>
    %6 = arith.mulf %4, %5 : vector<32x512xf32>
    %7 = vector.extract_strided_slice %1 {offsets = [0, 1], sizes = [32, 1], strides = [1, 1]} : vector<32x3xf32> to vector<32x1xf32>
    %8 = vector.extract_strided_slice %0 {offsets = [1, 0], sizes = [1, 512], strides = [1, 1]} : vector<3x512xf32> to vector<1x512xf32>
    %9 = vector.broadcast %7 : vector<32x1xf32> to vector<32x512xf32>
    %10 = vector.broadcast %8 : vector<1x512xf32> to vector<32x512xf32>
    %11 = arith.mulf %9, %10 : vector<32x512xf32>
    %12 = arith.addf %6, %11 : vector<32x512xf32>
    %13 = vector.extract_strided_slice %1 {offsets = [0, 2], sizes = [32, 1], strides = [1, 1]} : vector<32x3xf32> to vector<32x1xf32>
    %14 = vector.extract_strided_slice %0 {offsets = [2, 0], sizes = [1, 512], strides = [1, 1]} : vector<3x512xf32> to vector<1x512xf32>
    %15 = vector.broadcast %13 : vector<32x1xf32> to vector<32x512xf32>
    %16 = vector.broadcast %14 : vector<1x512xf32> to vector<32x512xf32>
    %17 = arith.mulf %15, %16 : vector<32x512xf32>
    %18 = arith.addf %12, %17 : vector<32x512xf32>
    %c0_3 = arith.constant 0 : index
    %c0_4 = arith.constant 0 : index
    %19 = vector.load %arg3[%c0_3, %c0_4] : memref<32x1xf32, #tpu.memory_space<vmem>>, vector<32x1xf32>
    %20 = vector.broadcast %19 : vector<32x1xf32> to vector<32x512xf32>
    %21 = arith.addf %18, %20 : vector<32x512xf32>
    %cst = arith.constant 3.000000e+01 : f32
    %22 = vector.broadcast %cst : f32 to vector<32x512xf32>
    %23 = arith.mulf %22, %21 : vector<32x512xf32>
    %24 = math.sin %23 : vector<32x512xf32>
    %c0_5 = arith.constant 0 : index
    %c0_6 = arith.constant 0 : index
    %25 = vector.load %arg4[%c0_5, %c0_6] : memref<32x512xf32, #tpu.memory_space<vmem>>, vector<32x512xf32>
    tpu.vector_store %arg4[%c0_5, %c0_6], %24 {strides = array<i32>} : memref<32x512xf32, #tpu.memory_space<vmem>>, vector<32x512xf32>,
    return
  }
  func.func @transform_0(%arg0: i32) -> (i32, i32) {
    %c0_i32 = arith.constant 0 : i32
    %c0_i32_0 = arith.constant 0 : i32
    return %c0_i32, %arg0 : i32, i32
  }
  func.func @transform_1(%arg0: i32) -> (i32, i32) {
    %c0_i32 = arith.constant 0 : i32
    %c0_i32_0 = arith.constant 0 : i32
    %c0_i32_1 = arith.constant 0 : i32
    return %c0_i32, %c0_i32_0 : i32, i32
  }
  func.func @transform_2(%arg0: i32) -> (i32, i32) {
    %c0_i32 = arith.constant 0 : i32
    %c0_i32_0 = arith.constant 0 : i32
    %c0_i32_1 = arith.constant 0 : i32
    return %c0_i32, %c0_i32_0 : i32, i32
  }
  func.func @transform_3(%arg0: i32) -> (i32, i32) {
    %c0_i32 = arith.constant 0 : i32
    %c0_i32_0 = arith.constant 0 : i32
    return %c0_i32, %arg0 : i32, i32
  }
}

</mosaic_0001>

<llo_original>
// kernel: tpu_custom_call.1
$region0: #{tpu_custom_call.1}
  #allocation0 [shape = 'u32[]', space=smem, size = 0x4, offset = 0x4, fixed_abs, tag = 'smem constant byte address 0x4 - core index']
  #allocation1 [shape = 'u32[144,128]{1,0:T(1,128)}', space=vmem, size = 0x12000, scoped, tag = 'internal scratch']
  %s0 = inlined_call_operand.vmem [shape: f32[3,2048], index: 0, kind: input, shape index: {}]
  %s1 = inlined_call_operand.vmem [shape: f32[32,3], index: 1, kind: input, shape index: {}]
  %s2 = inlined_call_operand.vmem [shape: f32[32,1], index: 2, kind: input, shape index: {}]
  %s3 = inlined_call_operand.hbm [shape: f32[32,2048], index: 3, kind: output, shape index: {}]
  %s4 = sld [smem:[#allocation0]]
  $region45: #{tpu_custom_call.1} parent=0
    _
  %s6 = ssub.s32 1, %s4
  %s7 = scalar_select 0, %s6, %s4
  $region1: #{tpu_custom_call.1} parent=0
    #allocation2 [shape = 'u8[131072]{0}', space=vmem, size = 0x20000, scoped, tag = 'output window, operand 0']
    #allocation3 [shape = 's32[2]{0}', space=sflag, size = 0x8, scoped, tag = 'scoped memory for tpu_custom_call.1']
    %8 = vsyncpa [#allocation3], 0
    %s9 = scalar_lea.sflag [#allocation3], 1
    %10 = vsyncpa %s9, 0
    loop: start=0, step=1, limit=6
    $region2: #{tpu_custom_call.1} parent=1 // loop_pre_header
      _
    $region3: #{tpu_custom_call.1} parent=1 // loop_header
      %s12 = sphi 0, %s16
      %p13 = scmp.ge.s32.totalorder %s12, 6
      %s22 = sphi 0, %s24
      %s25 = sphi 0, %s22
      %s26 = sphi 0, %s25
      %s42 = sphi 0, %s26
      %s46 = sphi 0, %s46
      %s48 = sphi 0, %s46
      %s49 = sphi 0, %s48
      %s63 = sphi 0, %s49
      %s67 = sphi 0, %s67
      %s69 = sphi 0, %s67
      %s70 = sphi 0, %s69
      %s84 = sphi 0, %s70
      %s90 = sphi 0, %s92
      %s93 = sphi 0, %s90
      %s94 = sphi 0, %s93
      %s110 = sphi 0, %s94
    $region4: #{tpu_custom_call.1} parent=1 // loop_header_branch
      %15 = sbr.rel (%p13) target = $region8
    $region5: #{tpu_custom_call.1} parent=1 // loop_body
      %s17 = ssub.s32 %s12, 1
      %s18 = ssub.s32 %s12, 2
      %s19 = sadd.s32 %s12, 1
      %s20 = ssub.s32 %s12, %s19
      %p21 = scmp.eq.s32.totalorder %s20, 0
      %s23 = sadd.s32 %s22, 1
      %s24 = scalar_select %p21, %s22, %s23
      %p27 = pneg %p21
      %p28 = scmp.eq.s32.totalorder %s12, 3
      %p29 = por %p27, %p28
      %p30 = scmp.ne.s32.totalorder %s22, %s25
      %p31 = scmp.eq.s32.totalorder %s12, 0
      %p32 = por %p30, %p31
      %p33 = scmp.ne.s32.totalorder %s22, %s25
      %p34 = scmp.eq.s32.totalorder %s17, 3
      %p35 = por %p33, %p34
      %p36 = scmp.ne.s32.totalorder %s25, %s26
      %p37 = scmp.eq.s32.totalorder %s17, 0
      %p38 = por %p36, %p37
      %p39 = scmp.ne.s32.totalorder %s25, %s26
      %p40 = scmp.eq.s32.totalorder %s18, 3
      %p41 = por %p39, %p40
      %p43 = scmp.ne.s32.totalorder %s26, %s42
      %p44 = scmp.eq.s32.totalorder %s18, 0
      %p45 = por %p43, %p44
      %s47 = sadd.s32 %s46, 1
      %p50 = scmp.eq.s32.totalorder %s12, 3
      %p51 = scmp.ne.s32.totalorder %s46, %s48
      %p52 = scmp.eq.s32.totalorder %s12, 0
      %p53 = por %p51, %p52
      %p54 = scmp.ne.s32.totalorder %s46, %s48
      %p55 = scmp.eq.s32.totalorder %s17, 3
      %p56 = por %p54, %p55
      %p57 = scmp.ne.s32.totalorder %s48, %s49
      %p58 = scmp.eq.s32.totalorder %s17, 0
      %p59 = por %p57, %p58
      %p60 = scmp.ne.s32.totalorder %s48, %s49
      %p61 = scmp.eq.s32.totalorder %s18, 3
      %p62 = por %p60, %p61
      %p64 = scmp.ne.s32.totalorder %s49, %s63
      %p65 = scmp.eq.s32.totalorder %s18, 0
      %p66 = por %p64, %p65
      %s68 = sadd.s32 %s67, 1
      %p71 = scmp.eq.s32.totalorder %s12, 3
      %p72 = scmp.ne.s32.totalorder %s67, %s69
      %p73 = scmp.eq.s32.totalorder %s12, 0
      %p74 = por %p72, %p73
      %p75 = scmp.ne.s32.totalorder %s67, %s69
      %p76 = scmp.eq.s32.totalorder %s17, 3
      %p77 = por %p75, %p76
      %p78 = scmp.ne.s32.totalorder %s69, %s70
      %p79 = scmp.eq.s32.totalorder %s17, 0
      %p80 = por %p78, %p79
      %p81 = scmp.ne.s32.totalorder %s69, %s70
      %p82 = scmp.eq.s32.totalorder %s18, 3
      %p83 = por %p81, %p82
      %p85 = scmp.ne.s32.totalorder %s70, %s84
      %p86 = scmp.eq.s32.totalorder %s18, 0
      %p87 = por %p85, %p86
      %s88 = ssub.s32 %s12, %s19
      %p89 = scmp.eq.s32.totalorder %s88, 0
      %s91 = sadd.s32 %s90, 1
      %s92 = scalar_select %p89, %s90, %s91
      %p95 = pneg %p89
      %p96 = scmp.eq.s32.totalorder %s12, 3
      %p97 = por %p95, %p96
      %p98 = scmp.ne.s32.totalorder %s90, %s93
      %p99 = scmp.eq.s32.totalorder %s12, 0
      %p100 = por %p98, %p99
      %p101 = scmp.ne.s32.totalorder %s90, %s93
      %p102 = scmp.eq.s32.totalorder %s17, 3
      %p103 = por %p101, %p102
      %p104 = scmp.ne.s32.totalorder %s93, %s94
      %p105 = scmp.eq.s32.totalorder %s17, 0
      %p106 = por %p104, %p105
      %p107 = scmp.ne.s32.totalorder %s93, %s94
      %p108 = scmp.eq.s32.totalorder %s18, 3
      %p109 = por %p107, %p108
      %p111 = scmp.ne.s32.totalorder %s94, %s110
      %p112 = scmp.eq.s32.totalorder %s18, 0
      %p113 = por %p111, %p112
      %p114 = scmp.le.s32.totalorder 1, %s12
      %p115 = scmp.lt.s32.totalorder %s12, 5
      %p116 = pnand %p114, %p115
      %p117 = pneg %p116
      // Predicated region
      $region9: #{tpu_custom_call.1} parent=5 // pred_check
        _
      $region10: #{tpu_custom_call.1} parent=5 // pred_check_branch
        %119 = sbr.rel (%p116) target = $region12
      $region11: #{tpu_custom_call.1} parent=5 // pred_region
        %s120 = ssub.s32 %s12, 1
        // Predicated region
        $region13: #{tpu_custom_call.1} parent=11 // pred_check
          %p121 = pneg %p59
        $region14: #{tpu_custom_call.1} parent=11 // pred_check_branch
          %123 = sbr.rel (%p121) target = $region16
        $region15: #{tpu_custom_call.1} parent=11 // pred_region
          _
        $region16: #{tpu_custom_call.1} parent=11 // pred_fallthru
          _
        // Predicated region
        $region17: #{tpu_custom_call.1} parent=11 // pred_check
          %p124 = pneg %p80
        $region18: #{tpu_custom_call.1} parent=11 // pred_check_branch
          %126 = sbr.rel (%p124) target = $region20
        $region19: #{tpu_custom_call.1} parent=11 // pred_region
          _
        $region20: #{tpu_custom_call.1} parent=11 // pred_fallthru
          _
      $region12: #{tpu_custom_call.1} parent=5 // pred_fallthru
        _
      %p127 = scmp.lt.s32.totalorder %s12, 4
      // Predicated region
      $region21: #{tpu_custom_call.1} parent=5 // pred_check
        %p128 = pneg %p127
      $region22: #{tpu_custom_call.1} parent=5 // pred_check_branch
        %130 = sbr.rel (%p128) target = $region24
      $region23: #{tpu_custom_call.1} parent=5 // pred_region
        // Predicated region
        $region25: #{tpu_custom_call.1} parent=23 // pred_check
          %p131 = pneg %p32
        $region26: #{tpu_custom_call.1} parent=23 // pred_check_branch
          %133 = sbr.rel (%p131) target = $region28
        $region27: #{tpu_custom_call.1} parent=23 // pred_region
          %s134 = smul.u32 4, %s12
          %p135 = scmp.lt.s32.totalorder %s134, 15
          %s136 = scalar_select %p135, %s134, 15
          %s137 = smul.addr %s136, 4
          %s138 = scalar_lea.vmem %s0, %s137
          %s139 = smul.u32 4, %s12
        $region28: #{tpu_custom_call.1} parent=23 // pred_fallthru
          _
      $region24: #{tpu_custom_call.1} parent=5 // pred_fallthru
        _
      %p140 = scmp.le.s32.totalorder 1, %s12
      %p141 = scmp.lt.s32.totalorder %s12, 5
      %p142 = pnand %p140, %p141
      %p143 = pneg %p142
      // Predicated region
      $region29: #{tpu_custom_call.1} parent=5 // pred_check
        _
      $region30: #{tpu_custom_call.1} parent=5 // pred_check_branch
        %145 = sbr.rel (%p142) target = $region32
      $region31: #{tpu_custom_call.1} parent=5 // pred_region
        %s146 = ssub.s32 %s12, 1
        %s147 = smul.u32 4, %s17
        %p148 = scmp.lt.s32.totalorder %s147, 15
        %s149 = scalar_select %p148, %s147, 15
        %s150 = smul.addr %s149, 4
        %s151 = scalar_lea.vmem %s0, %s150
        %p152 = pneg %p38
        %p153 = pneg %p35
        %p154 = pneg %p59
        %p155 = pneg %p56
        %p156 = pneg %p80
        %p157 = pneg %p77
        %p158 = pneg %p106
        %p159 = pneg %p103
        %s160 = sand.u32 %s93, 1
        %s161 = scalar_lea.sflag [#allocation3], %s160
        %s162 = sand.u32 %s93, 1
        %s163 = smul.addr %s162, 128
        %s164 = scalar_lea.vmem [#allocation2], %s163
        %s165 = smul.u32 4, %s17
        %p166 = scmp.lt.s32.totalorder %s165, 15
        %s167 = scalar_select %p166, %s165, 15
        %s168 = smul.addr %s167, 4
        %s169 = scalar_lea.vmem %s0, %s168
        %s170 = smul.u32 4, %s17
        %s171 = smul.u32 4, %s17
        %v172 = vld [vmem:[%s169] sm:$0x77]
        %v173 = vld [vmem:[%s169 + $0x8] sm:$0x77]
        %v174 = vld [vmem:[%s1] sm:$0xff]
        %v175 = vld [vmem:[%s1 + $0x8] sm:$0xff]
        %v176 = vld [vmem:[%s1 + $0x10] sm:$0xff]
        %v177 = vld [vmem:[%s1 + $0x18] sm:$0xff]
        %179 = vset.pattern.permute.xlu0 0
        %180 = vperm.xlu0 %179, %v174
        %v181 = vpop.permute.xlu0 %180
        %184 = vset.pattern.permute.xlu0 0
        %185 = vperm.xlu0 %184, %v175
        %v186 = vpop.permute.xlu0 %185
        %189 = vset.pattern.permute.xlu0 0
        %190 = vperm.xlu0 %189, %v176
        %v191 = vpop.permute.xlu0 %190
        %194 = vset.pattern.permute.xlu0 0
        %195 = vperm.xlu0 %194, %v177
        %v196 = vpop.permute.xlu0 %195
        %v200 = vlaneseq
        %v201 = vshrl.u32 %v200, 7
        %v202 = vsub.s32 0, %v201
        %v203 = vrot.slane %v172, %v202
        %v204 = vlaneseq
        %v205 = vshrl.u32 %v204, 7
        %v206 = vsub.s32 4, %v205
        %v207 = vrot.slane %v172, %v206
        %v208 = vlaneseq
        %v209 = vshrl.u32 %v208, 7
        %v210 = vsub.s32 0, %v209
        %v211 = vrot.slane %v173, %v210
        %v212 = vlaneseq
        %v213 = vshrl.u32 %v212, 7
        %v214 = vsub.s32 4, %v213
        %v215 = vrot.slane %v173, %v214
        %v220 = vlaneseq
        %v221 = vshrl.u32 %v220, 7
        %v222 = vsub.s32 0, %v221
        %v223 = vrot.slane %v203, %v222
        %v224 = vlaneseq
        %v225 = vshrl.u32 %v224, 7
        %v226 = vsub.s32 0, %v225
        %v227 = vrot.slane %v207, %v226
        %v228 = vlaneseq
        %v229 = vshrl.u32 %v228, 7
        %v230 = vsub.s32 0, %v229
        %v231 = vrot.slane %v211, %v230
        %v232 = vlaneseq
        %v233 = vshrl.u32 %v232, 7
        %v234 = vsub.s32 0, %v233
        %v235 = vrot.slane %v215, %v234
        %v236 = vmul.f32 %v181, %v223
        %v237 = vmul.f32 %v181, %v227
        %v238 = vmul.f32 %v181, %v231
        %v239 = vmul.f32 %v181, %v235
        %v240 = vmul.f32 %v186, %v223
        %v241 = vmul.f32 %v186, %v227
        %v242 = vmul.f32 %v186, %v231
        %v243 = vmul.f32 %v186, %v235
        %v244 = vmul.f32 %v191, %v223
        %v245 = vmul.f32 %v191, %v227
        %v246 = vmul.f32 %v191, %v231
        %v247 = vmul.f32 %v191, %v235
        %v248 = vmul.f32 %v196, %v223
        %v249 = vmul.f32 %v196, %v227
        %v250 = vmul.f32 %v196, %v231
        %v251 = vmul.f32 %v196, %v235
        %252 = vset.pattern.permute.xlu0 1
        %253 = vperm.xlu0 %252, %v174
        %v254 = vpop.permute.xlu0 %253
        %256 = vset.pattern.permute.xlu0 1
        %257 = vperm.xlu0 %256, %v175
        %v258 = vpop.permute.xlu0 %257
        %260 = vset.pattern.permute.xlu0 1
        %261 = vperm.xlu0 %260, %v176
        %v262 = vpop.permute.xlu0 %261
        %264 = vset.pattern.permute.xlu0 1
        %265 = vperm.xlu0 %264, %v177
        %v266 = vpop.permute.xlu0 %265
        %v268 = vlaneseq
        %v269 = vshrl.u32 %v268, 7
        %v270 = vsub.s32 1, %v269
        %v271 = vrot.slane %v172, %v270
        %v272 = vlaneseq
        %v273 = vshrl.u32 %v272, 7
        %v274 = vsub.s32 5, %v273
        %v275 = vrot.slane %v172, %v274
        %v276 = vlaneseq
        %v277 = vshrl.u32 %v276, 7
        %v278 = vsub.s32 1, %v277
        %v279 = vrot.slane %v173, %v278
        %v280 = vlaneseq
        %v281 = vshrl.u32 %v280, 7
        %v282 = vsub.s32 5, %v281
        %v283 = vrot.slane %v173, %v282
        %v288 = vlaneseq
        %v289 = vshrl.u32 %v288, 7
        %v290 = vsub.s32 1, %v289
        %v291 = vrot.slane %v271, %v290
        %v292 = vlaneseq
        %v293 = vshrl.u32 %v292, 7
        %v294 = vsub.s32 1, %v293
        %v295 = vrot.slane %v275, %v294
        %v296 = vlaneseq
        %v297 = vshrl.u32 %v296, 7
        %v298 = vsub.s32 1, %v297
        %v299 = vrot.slane %v279, %v298
        %v300 = vlaneseq
        %v301 = vshrl.u32 %v300, 7
        %v302 = vsub.s32 1, %v301
        %v303 = vrot.slane %v283, %v302
        %v304 = vmul.f32 %v254, %v291
        %v305 = vmul.f32 %v254, %v295
        %v306 = vmul.f32 %v254, %v299
        %v307 = vmul.f32 %v254, %v303
        %v308 = vmul.f32 %v258, %v291
        %v309 = vmul.f32 %v258, %v295
        %v310 = vmul.f32 %v258, %v299
        %v311 = vmul.f32 %v258, %v303
        %v312 = vmul.f32 %v262, %v291
        %v313 = vmul.f32 %v262, %v295
        %v314 = vmul.f32 %v262, %v299
        %v315 = vmul.f32 %v262, %v303
        %v316 = vmul.f32 %v266, %v291
        %v317 = vmul.f32 %v266, %v295
        %v318 = vmul.f32 %v266, %v299
        %v319 = vmul.f32 %v266, %v303
        %v320 = vadd.f32 %v236, %v304
        %v321 = vadd.f32 %v237, %v305
        %v322 = vadd.f32 %v238, %v306
        %v323 = vadd.f32 %v239, %v307
        %v324 = vadd.f32 %v240, %v308
        %v325 = vadd.f32 %v241, %v309
        %v326 = vadd.f32 %v242, %v310
        %v327 = vadd.f32 %v243, %v311
        %v328 = vadd.f32 %v244, %v312
        %v329 = vadd.f32 %v245, %v313
        %v330 = vadd.f32 %v246, %v314
        %v331 = vadd.f32 %v247, %v315
        %v332 = vadd.f32 %v248, %v316
        %v333 = vadd.f32 %v249, %v317
        %v334 = vadd.f32 %v250, %v318
        %v335 = vadd.f32 %v251, %v319
        %336 = vset.pattern.permute.xlu0 2
        %337 = vperm.xlu0 %336, %v174
        %v338 = vpop.permute.xlu0 %337
        %340 = vset.pattern.permute.xlu0 2
        %341 = vperm.xlu0 %340, %v175
        %v342 = vpop.permute.xlu0 %341
        %344 = vset.pattern.permute.xlu0 2
        %345 = vperm.xlu0 %344, %v176
        %v346 = vpop.permute.xlu0 %345
        %348 = vset.pattern.permute.xlu0 2
        %349 = vperm.xlu0 %348, %v177
        %v350 = vpop.permute.xlu0 %349
        %v352 = vlaneseq
        %v353 = vshrl.u32 %v352, 7
        %v354 = vsub.s32 2, %v353
        %v355 = vrot.slane %v172, %v354
        %v356 = vlaneseq
        %v357 = vshrl.u32 %v356, 7
        %v358 = vsub.s32 6, %v357
        %v359 = vrot.slane %v172, %v358
        %v360 = vlaneseq
        %v361 = vshrl.u32 %v360, 7
        %v362 = vsub.s32 2, %v361
        %v363 = vrot.slane %v173, %v362
        %v364 = vlaneseq
        %v365 = vshrl.u32 %v364, 7
        %v366 = vsub.s32 6, %v365
        %v367 = vrot.slane %v173, %v366
        %v372 = vlaneseq
        %v373 = vshrl.u32 %v372, 7
        %v374 = vsub.s32 2, %v373
        %v375 = vrot.slane %v355, %v374
        %v376 = vlaneseq
        %v377 = vshrl.u32 %v376, 7
        %v378 = vsub.s32 2, %v377
        %v379 = vrot.slane %v359, %v378
        %v380 = vlaneseq
        %v381 = vshrl.u32 %v380, 7
        %v382 = vsub.s32 2, %v381
        %v383 = vrot.slane %v363, %v382
        %v384 = vlaneseq
        %v385 = vshrl.u32 %v384, 7
        %v386 = vsub.s32 2, %v385
        %v387 = vrot.slane %v367, %v386
        %v388 = vmul.f32 %v338, %v375
        %v389 = vmul.f32 %v338, %v379
        %v390 = vmul.f32 %v338, %v383
        %v391 = vmul.f32 %v338, %v387
        %v392 = vmul.f32 %v342, %v375
        %v393 = vmul.f32 %v342, %v379
        %v394 = vmul.f32 %v342, %v383
        %v395 = vmul.f32 %v342, %v387
        %v396 = vmul.f32 %v346, %v375
        %v397 = vmul.f32 %v346, %v379
        %v398 = vmul.f32 %v346, %v383
        %v399 = vmul.f32 %v346, %v387
        %v400 = vmul.f32 %v350, %v375
        %v401 = vmul.f32 %v350, %v379
        %v402 = vmul.f32 %v350, %v383
        %v403 = vmul.f32 %v350, %v387
        %v404 = vadd.f32 %v320, %v388
        %v405 = vadd.f32 %v321, %v389
        %v406 = vadd.f32 %v322, %v390
        %v407 = vadd.f32 %v323, %v391
        %v408 = vadd.f32 %v324, %v392
        %v409 = vadd.f32 %v325, %v393
        %v410 = vadd.f32 %v326, %v394
        %v411 = vadd.f32 %v327, %v395
        %v412 = vadd.f32 %v328, %v396
        %v413 = vadd.f32 %v329, %v397
        %v414 = vadd.f32 %v330, %v398
        %v415 = vadd.f32 %v331, %v399
        %v416 = vadd.f32 %v332, %v400
        %v417 = vadd.f32 %v333, %v401
        %v418 = vadd.f32 %v334, %v402
        %v419 = vadd.f32 %v335, %v403
        %v420 = vld [vmem:[%s2] sm:$0xff]
        %v421 = vld [vmem:[%s2 + $0x8] sm:$0xff]
        %v422 = vld [vmem:[%s2 + $0x10] sm:$0xff]
        %v423 = vld [vmem:[%s2 + $0x18] sm:$0xff]
        %425 = vset.pattern.permute.xlu0 0
        %426 = vperm.xlu0 %425, %v420
        %v427 = vpop.permute.xlu0 %426
        %430 = vset.pattern.permute.xlu0 0
        %431 = vperm.xlu0 %430, %v421
        %v432 = vpop.permute.xlu0 %431
        %435 = vset.pattern.permute.xlu0 0
        %436 = vperm.xlu0 %435, %v422
        %v437 = vpop.permute.xlu0 %436
        %440 = vset.pattern.permute.xlu0 0
        %441 = vperm.xlu0 %440, %v423
        %v442 = vpop.permute.xlu0 %441
        %v444 = vadd.f32 %v404, %v427
        %v445 = vadd.f32 %v405, %v427
        %v446 = vadd.f32 %v406, %v427
        %v447 = vadd.f32 %v407, %v427
        %v448 = vadd.f32 %v408, %v432
        %v449 = vadd.f32 %v409, %v432
        %v450 = vadd.f32 %v410, %v432
        %v451 = vadd.f32 %v411, %v432
        %v452 = vadd.f32 %v412, %v437
        %v453 = vadd.f32 %v413, %v437
        %v454 = vadd.f32 %v414, %v437
        %v455 = vadd.f32 %v415, %v437
        %v456 = vadd.f32 %v416, %v442
        %v457 = vadd.f32 %v417, %v442
        %v458 = vadd.f32 %v418, %v442
        %v459 = vadd.f32 %v419, %v442
        %v460 = vmul.f32 %v444, 30.0
        %v461 = vmul.f32 %v445, 30.0
        %v462 = vmul.f32 %v446, 30.0
        %v463 = vmul.f32 %v447, 30.0
        %v464 = vmul.f32 %v448, 30.0
        %v465 = vmul.f32 %v449, 30.0
        %v466 = vmul.f32 %v450, 30.0
        %v467 = vmul.f32 %v451, 30.0
        %v468 = vmul.f32 %v452, 30.0
        %v469 = vmul.f32 %v453, 30.0
        %v470 = vmul.f32 %v454, 30.0
        %v471 = vmul.f32 %v455, 30.0
        %v472 = vmul.f32 %v456, 30.0
        %v473 = vmul.f32 %v457, 30.0
        %v474 = vmul.f32 %v458, 30.0
        %v475 = vmul.f32 %v459, 30.0
        %v476 = vand.u32 2147483647, %v460
        %vm477 = vcmp.le.f32.partialorder %v476, 0.7853982
        %vm478 = vcmp.lt.s32.totalorder %v460, 0
        %v479 = vand.u32 %v460, 2139095040
        %v480 = vshrl.u32 %v479, 23
        %v481 = vsub.s32 %v480, 127
        %v482 = vand.u32 2147483647, %v460
        %v483 = vand.u32 %v482, 8388607
        %v484 = vor.u32 %v483, 8388608
        %v485 = vsub.s32 0, %v484
        %v486 = vadd.s32 %v481, 1
        %vm487 = vcmp.gt.s32.totalorder %v486, 0
        %v488 = vsel %vm487, %v486, 0
        %v489 = vshrl.u32 %v488, 5
        %v490 = vand.u32 %v488, 31
        %v491 = vsub.s32 32, %v490
        %v492 = vshrl.u32 683565275, %v491
        %v493 = vshll.u32 683565275, %v490
        %v494 = vshrl.u32 2475754826, %v491
        %v495 = vor.u32 %v493, %v494
        %v496 = vshll.u32 2475754826, %v490
        %v497 = vshrl.u32 2131351028, %v491
        %v498 = vor.u32 %v496, %v497
        %v499 = vshll.u32 2131351028, %v490
        %v500 = vshrl.u32 2102212464, %v491
        %v501 = vor.u32 %v499, %v500
        %v502 = vshll.u32 2102212464, %v490
        %v503 = vshrl.u32 920167782, %v491
        %v504 = vor.u32 %v502, %v503
        %v505 = vshll.u32 920167782, %v490
        %v506 = vshrl.u32 1326507024, %v491
        %v507 = vor.u32 %v505, %v506
        %vm508 = vcmp.lt.s32.totalorder %v489, 1
        %vm509 = vcmp.lt.s32.totalorder %v489, 2
        %vm510 = vcmp.lt.s32.totalorder %v489, 3
        %vm511 = vcmp.lt.s32.totalorder %v489, 4
        %v512 = vsel %vm508, %v492, %v495
        %v513 = vsel %vm511, %v501, 2102212464
        %v514 = vsel %vm510, %v498, %v513
        %v515 = vsel %vm509, %v512, %v514
        %v516 = vsel %vm508, %v495, %v498
        %v517 = vsel %vm511, %v504, 920167782
        %v518 = vsel %vm510, %v501, %v517
        %v519 = vsel %vm509, %v516, %v518
        %v520 = vsel %vm508, %v498, %v501
        %v521 = vsel %vm511, %v507, 1326507024
        %v522 = vsel %vm510, %v504, %v521
        %v523 = vsel %vm509, %v520, %v522
        %v524 = vshll.u32 %v484, 8
        %v525 = vmul.u32.u64.compose %v524, %v523
        %v526 = vextract.low.u32 %v525
        %v527 = vextract.high.u32 %v525
        %v528 = vmul.u32.u64.compose %v524, %v519
        %v529 = vextract.low.u32 %v528
        %v530 = vextract.high.u32 %v528
        %v531 = vmul.u32 %v524, %v515
        %v532 = vadd.s32 %v527, %v529
        %vm533 = vc.u32 %v527, %v529
        %v534 = vadd.s32 %v530, 1
        %v535 = vsel %vm533, %v534, %v530
        %v536 = vadd.s32 %v531, %v535
        %v537 = vadd.s32 %v536, 536870912
        %v538 = vshrl.u32 %v537, 30
        %v539 = vshll.u32 %v538, 30
        %v540 = vsub.s32 %v536, %v539
        %vm541 = vcmp.lt.s32.totalorder %v540, 0
        %v542 = vsub.s32 0, %v540
        %v543 = vsel %vm541, %v542, %v540
        %v544 = vclz %v543
        %v545 = vsub.s32 %v544, 2
        %vm546 = vcmp.gt.s32.totalorder 0, %v545
        %v547 = vsel %vm546, 0, %v545
        %v548 = vsub.s32 32, %v547
        %v549 = vshll.u32 %v540, %v547
        %v550 = vshrl.u32 %v532, %v548
        %v551 = vor.u32 %v549, %v550
        %v552 = vsub.s32 4294967266, %v547
        %v553 = vadd.s32 %v552, 127
        %v554 = vshll.u32 %v553, 23
        %v555 = vor.u32 4788187, %v554
        %v556 = vand.u32 2147483647, %v555
        %v558 = vcvt.s32.f32 %v551
        %v559 = vmul.f32 %v558, %v556
        %v560 = vxor.u32 %v559, 2147483648
        %v561 = vsel %vm478, %v560, %v559
        %v562 = vsub.s32 4, %v538
        %v563 = vsel %vm478, %v562, %v538
        %v564 = vsel %vm477, %v460, %v561
        %v565 = vsel %vm477, 0, %v563
        %v566 = vcosq.f32.pop %v564
        %v567 = vsinq.f32.pop %v564
        %vm568 = vweird.f32 %v460
        %v569 = vadd.s32 %v565, 3
        %v570 = vand.u32 %v569, 3
        %vm571 = vcmp.lt.s32.totalorder %v570, 2
        %vm572 = vcmp.eq.s32.totalorder %v570, 0
        %v573 = vxor.u32 %v567, 2147483648
        %v574 = vsel %vm572, %v566, %v573
        %vm575 = vcmp.eq.s32.totalorder %v570, 2
        %v576 = vxor.u32 %v566, 2147483648
        %v577 = vsel %vm575, %v576, %v567
        %v578 = vsel %vm571, %v574, %v577
        %v579 = vsel %vm568, nan, %v578
        %v580 = vand.u32 2147483647, %v461
        %vm581 = vcmp.le.f32.partialorder %v580, 0.7853982
        %vm582 = vcmp.lt.s32.totalorder %v461, 0
        %v583 = vand.u32 %v461, 2139095040
        %v584 = vshrl.u32 %v583, 23
        %v585 = vsub.s32 %v584, 127
        %v586 = vand.u32 2147483647, %v461
        %v587 = vand.u32 %v586, 8388607
        %v588 = vor.u32 %v587, 8388608
        %v589 = vsub.s32 0, %v588
        %v590 = vadd.s32 %v585, 1
        %vm591 = vcmp.gt.s32.totalorder %v590, 0
        %v592 = vsel %vm591, %v590, 0
        %v593 = vshrl.u32 %v592, 5
        %v594 = vand.u32 %v592, 31
        %v595 = vsub.s32 32, %v594
        %v596 = vshrl.u32 683565275, %v595
        %v597 = vshll.u32 683565275, %v594
        %v598 = vshrl.u32 2475754826, %v595
        %v599 = vor.u32 %v597, %v598
        %v600 = vshll.u32 2475754826, %v594
        %v601 = vshrl.u32 2131351028, %v595
        %v602 = vor.u32 %v600, %v601
        %v603 = vshll.u32 2131351028, %v594
        %v604 = vshrl.u32 2102212464, %v595
        %v605 = vor.u32 %v603, %v604
        %v606 = vshll.u32 2102212464, %v594
        %v607 = vshrl.u32 920167782, %v595
        %v608 = vor.u32 %v606, %v607
        %v609 = vshll.u32 920167782, %v594
        %v610 = vshrl.u32 1326507024, %v595
        %v611 = vor.u32 %v609, %v610
        %vm612 = vcmp.lt.s32.totalorder %v593, 1
        %vm613 = vcmp.lt.s32.totalorder %v593, 2
        %vm614 = vcmp.lt.s32.totalorder %v593, 3
        %vm615 = vcmp.lt.s32.totalorder %v593, 4
        %v616 = vsel %vm612, %v596, %v599
        %v617 = vsel %vm615, %v605, 2102212464
        %v618 = vsel %vm614, %v602, %v617
        %v619 = vsel %vm613, %v616, %v618
        %v620 = vsel %vm612, %v599, %v602
        %v621 = vsel %vm615, %v608, 920167782
        %v622 = vsel %vm614, %v605, %v621
        %v623 = vsel %vm613, %v620, %v622
        %v624 = vsel %vm612, %v602, %v605
        %v625 = vsel %vm615, %v611, 1326507024
        %v626 = vsel %vm614, %v608, %v625
        %v627 = vsel %vm613, %v624, %v626
        %v628 = vshll.u32 %v588, 8
        %v629 = vmul.u32.u64.compose %v628, %v627
        %v630 = vextract.low.u32 %v629
        %v631 = vextract.high.u32 %v629
        %v632 = vmul.u32.u64.compose %v628, %v623
        %v633 = vextract.low.u32 %v632
        %v634 = vextract.high.u32 %v632
        %v635 = vmul.u32 %v628, %v619
        %v636 = vadd.s32 %v631, %v633
        %vm637 = vc.u32 %v631, %v633
        %v638 = vadd.s32 %v634, 1
        %v639 = vsel %vm637, %v638, %v634
        %v640 = vadd.s32 %v635, %v639
        %v641 = vadd.s32 %v640, 536870912
        %v642 = vshrl.u32 %v641, 30
        %v643 = vshll.u32 %v642, 30
        %v644 = vsub.s32 %v640, %v643
        %vm645 = vcmp.lt.s32.totalorder %v644, 0
        %v646 = vsub.s32 0, %v644
        %v647 = vsel %vm645, %v646, %v644
        %v648 = vclz %v647
        %v649 = vsub.s32 %v648, 2
        %vm650 = vcmp.gt.s32.totalorder 0, %v649
        %v651 = vsel %vm650, 0, %v649
        %v652 = vsub.s32 32, %v651
        %v653 = vshll.u32 %v644, %v651
        %v654 = vshrl.u32 %v636, %v652
        %v655 = vor.u32 %v653, %v654
        %v656 = vsub.s32 4294967266, %v651
        %v657 = vadd.s32 %v656, 127
        %v658 = vshll.u32 %v657, 23
        %v659 = vor.u32 4788187, %v658
        %v660 = vand.u32 2147483647, %v659
        %v662 = vcvt.s32.f32 %v655
        %v663 = vmul.f32 %v662, %v660
        %v664 = vxor.u32 %v663, 2147483648
        %v665 = vsel %vm582, %v664, %v663
        %v666 = vsub.s32 4, %v642
        %v667 = vsel %vm582, %v666, %v642
        %v668 = vsel %vm581, %v461, %v665
        %v669 = vsel %vm581, 0, %v667
        %v670 = vcosq.f32.pop %v668
        %v671 = vsinq.f32.pop %v668
        %vm672 = vweird.f32 %v461
        %v673 = vadd.s32 %v669, 3
        %v674 = vand.u32 %v673, 3
        %vm675 = vcmp.lt.s32.totalorder %v674, 2
        %vm676 = vcmp.eq.s32.totalorder %v674, 0
        %v677 = vxor.u32 %v671, 2147483648
        %v678 = vsel %vm676, %v670, %v677
        %vm679 = vcmp.eq.s32.totalorder %v674, 2
        %v680 = vxor.u32 %v670, 2147483648
        %v681 = vsel %vm679, %v680, %v671
        %v682 = vsel %vm675, %v678, %v681
        %v683 = vsel %vm672, nan, %v682
        %v684 = vand.u32 2147483647, %v462
        %vm685 = vcmp.le.f32.partialorder %v684, 0.7853982
        %vm686 = vcmp.lt.s32.totalorder %v462, 0
        %v687 = vand.u32 %v462, 2139095040
        %v688 = vshrl.u32 %v687, 23
        %v689 = vsub.s32 %v688, 127
        %v690 = vand.u32 2147483647, %v462
        %v691 = vand.u32 %v690, 8388607
        %v692 = vor.u32 %v691, 8388608
        %v693 = vsub.s32 0, %v692
        %v694 = vadd.s32 %v689, 1
        %vm695 = vcmp.gt.s32.totalorder %v694, 0
        %v696 = vsel %vm695, %v694, 0
        %v697 = vshrl.u32 %v696, 5
        %v698 = vand.u32 %v696, 31
        %v699 = vsub.s32 32, %v698
        %v700 = vshrl.u32 683565275, %v699
        %v701 = vshll.u32 683565275, %v698
        %v702 = vshrl.u32 2475754826, %v699
        %v703 = vor.u32 %v701, %v702
        %v704 = vshll.u32 2475754826, %v698
        %v705 = vshrl.u32 2131351028, %v699
        %v706 = vor.u32 %v704, %v705
        %v707 = vshll.u32 2131351028, %v698
        %v708 = vshrl.u32 2102212464, %v699
        %v709 = vor.u32 %v707, %v708
        %v710 = vshll.u32 2102212464, %v698
        %v711 = vshrl.u32 920167782, %v699
        %v712 = vor.u32 %v710, %v711
        %v713 = vshll.u32 920167782, %v698
        %v714 = vshrl.u32 1326507024, %v699
        %v715 = vor.u32 %v713, %v714
        %vm716 = vcmp.lt.s32.totalorder %v697, 1
        %vm717 = vcmp.lt.s32.totalorder %v697, 2
        %vm718 = vcmp.lt.s32.totalorder %v697, 3
        %vm719 = vcmp.lt.s32.totalorder %v697, 4
        %v720 = vsel %vm716, %v700, %v703
        %v721 = vsel %vm719, %v709, 2102212464
        %v722 = vsel %vm718, %v706, %v721
        %v723 = vsel %vm717, %v720, %v722
        %v724 = vsel %vm716, %v703, %v706
        %v725 = vsel %vm719, %v712, 920167782
        %v726 = vsel %vm718, %v709, %v725
        %v727 = vsel %vm717, %v724, %v726
        %v728 = vsel %vm716, %v706, %v709
        %v729 = vsel %vm719, %v715, 1326507024
        %v730 = vsel %vm718, %v712, %v729
        %v731 = vsel %vm717, %v728, %v730
        %v732 = vshll.u32 %v692, 8
        %v733 = vmul.u32.u64.compose %v732, %v731
        %v734 = vextract.low.u32 %v733
        %v735 = vextract.high.u32 %v733
        %v736 = vmul.u32.u64.compose %v732, %v727
        %v737 = vextract.low.u32 %v736
        %v738 = vextract.high.u32 %v736
        %v739 = vmul.u32 %v732, %v723
        %v740 = vadd.s32 %v735, %v737
        %vm741 = vc.u32 %v735, %v737
        %v742 = vadd.s32 %v738, 1
        %v743 = vsel %vm741, %v742, %v738
        %v744 = vadd.s32 %v739, %v743
        %v745 = vadd.s32 %v744, 536870912
        %v746 = vshrl.u32 %v745, 30
        %v747 = vshll.u32 %v746, 30
        %v748 = vsub.s32 %v744, %v747
        %vm749 = vcmp.lt.s32.totalorder %v748, 0
        %v750 = vsub.s32 0, %v748
        %v751 = vsel %vm749, %v750, %v748
        %v752 = vclz %v751
        %v753 = vsub.s32 %v752, 2
        %vm754 = vcmp.gt.s32.totalorder 0, %v753
        %v755 = vsel %vm754, 0, %v753
        %v756 = vsub.s32 32, %v755
        %v757 = vshll.u32 %v748, %v755
        %v758 = vshrl.u32 %v740, %v756
        %v759 = vor.u32 %v757, %v758
        %v760 = vsub.s32 4294967266, %v755
        %v761 = vadd.s32 %v760, 127
        %v762 = vshll.u32 %v761, 23
        %v763 = vor.u32 4788187, %v762
        %v764 = vand.u32 2147483647, %v763
        %v766 = vcvt.s32.f32 %v759
        %v767 = vmul.f32 %v766, %v764
        %v768 = vxor.u32 %v767, 2147483648
        %v769 = vsel %vm686, %v768, %v767
        %v770 = vsub.s32 4, %v746
        %v771 = vsel %vm686, %v770, %v746
        %v772 = vsel %vm685, %v462, %v769
        %v773 = vsel %vm685, 0, %v771
        %v774 = vcosq.f32.pop %v772
        %v775 = vsinq.f32.pop %v772
        %vm776 = vweird.f32 %v462
        %v777 = vadd.s32 %v773, 3
        %v778 = vand.u32 %v777, 3
        %vm779 = vcmp.lt.s32.totalorder %v778, 2
        %vm780 = vcmp.eq.s32.totalorder %v778, 0
        %v781 = vxor.u32 %v775, 2147483648
        %v782 = vsel %vm780, %v774, %v781
        %vm783 = vcmp.eq.s32.totalorder %v778, 2
        %v784 = vxor.u32 %v774, 2147483648
        %v785 = vsel %vm783, %v784, %v775
        %v786 = vsel %vm779, %v782, %v785
        %v787 = vsel %vm776, nan, %v786
        %v788 = vand.u32 2147483647, %v463
        %vm789 = vcmp.le.f32.partialorder %v788, 0.7853982
        %vm790 = vcmp.lt.s32.totalorder %v463, 0
        %v791 = vand.u32 %v463, 2139095040
        %v792 = vshrl.u32 %v791, 23
        %v793 = vsub.s32 %v792, 127
        %v794 = vand.u32 2147483647, %v463
        %v795 = vand.u32 %v794, 8388607
        %v796 = vor.u32 %v795, 8388608
        %v797 = vsub.s32 0, %v796
        %v798 = vadd.s32 %v793, 1
        %vm799 = vcmp.gt.s32.totalorder %v798, 0
        %v800 = vsel %vm799, %v798, 0
        %v801 = vshrl.u32 %v800, 5
        %v802 = vand.u32 %v800, 31
        %v803 = vsub.s32 32, %v802
        %v804 = vshrl.u32 683565275, %v803
        %v805 = vshll.u32 683565275, %v802
        %v806 = vshrl.u32 2475754826, %v803
        %v807 = vor.u32 %v805, %v806
        %v808 = vshll.u32 2475754826, %v802
        %v809 = vshrl.u32 2131351028, %v803
        %v810 = vor.u32 %v808, %v809
        %v811 = vshll.u32 2131351028, %v802
        %v812 = vshrl.u32 2102212464, %v803
        %v813 = vor.u32 %v811, %v812
        %v814 = vshll.u32 2102212464, %v802
        %v815 = vshrl.u32 920167782, %v803
        %v816 = vor.u32 %v814, %v815
        %v817 = vshll.u32 920167782, %v802
        %v818 = vshrl.u32 1326507024, %v803
        %v819 = vor.u32 %v817, %v818
        %vm820 = vcmp.lt.s32.totalorder %v801, 1
        %vm821 = vcmp.lt.s32.totalorder %v801, 2
        %vm822 = vcmp.lt.s32.totalorder %v801, 3
        %vm823 = vcmp.lt.s32.totalorder %v801, 4
        %v824 = vsel %vm820, %v804, %v807
        %v825 = vsel %vm823, %v813, 2102212464
        %v826 = vsel %vm822, %v810, %v825
        %v827 = vsel %vm821, %v824, %v826
        %v828 = vsel %vm820, %v807, %v810
        %v829 = vsel %vm823, %v816, 920167782
        %v830 = vsel %vm822, %v813, %v829
        %v831 = vsel %vm821, %v828, %v830
        %v832 = vsel %vm820, %v810, %v813
        %v833 = vsel %vm823, %v819, 1326507024
        %v834 = vsel %vm822, %v816, %v833
        %v835 = vsel %vm821, %v832, %v834
        %v836 = vshll.u32 %v796, 8
        %v837 = vmul.u32.u64.compose %v836, %v835
        %v838 = vextract.low.u32 %v837
        %v839 = vextract.high.u32 %v837
        %v840 = vmul.u32.u64.compose %v836, %v831
        %v841 = vextract.low.u32 %v840
        %v842 = vextract.high.u32 %v840
        %v843 = vmul.u32 %v836, %v827
        %v844 = vadd.s32 %v839, %v841
        %vm845 = vc.u32 %v839, %v841
        %v846 = vadd.s32 %v842, 1
        %v847 = vsel %vm845, %v846, %v842
        %v848 = vadd.s32 %v843, %v847
        %v849 = vadd.s32 %v848, 536870912
        %v850 = vshrl.u32 %v849, 30
        %v851 = vshll.u32 %v850, 30
        %v852 = vsub.s32 %v848, %v851
        %vm853 = vcmp.lt.s32.totalorder %v852, 0
        %v854 = vsub.s32 0, %v852
        %v855 = vsel %vm853, %v854, %v852
        %v856 = vclz %v855
        %v857 = vsub.s32 %v856, 2
        %vm858 = vcmp.gt.s32.totalorder 0, %v857
        %v859 = vsel %vm858, 0, %v857
        %v860 = vsub.s32 32, %v859
        %v861 = vshll.u32 %v852, %v859
        %v862 = vshrl.u32 %v844, %v860
        %v863 = vor.u32 %v861, %v862
        %v864 = vsub.s32 4294967266, %v859
        %v865 = vadd.s32 %v864, 127
        %v866 = vshll.u32 %v865, 23
        %v867 = vor.u32 4788187, %v866
        %v868 = vand.u32 2147483647, %v867
        %v870 = vcvt.s32.f32 %v863
        %v871 = vmul.f32 %v870, %v868
        %v872 = vxor.u32 %v871, 2147483648
        %v873 = vsel %vm790, %v872, %v871
        %v874 = vsub.s32 4, %v850
        %v875 = vsel %vm790, %v874, %v850
        %v876 = vsel %vm789, %v463, %v873
        %v877 = vsel %vm789, 0, %v875
        %v878 = vcosq.f32.pop %v876
        %v879 = vsinq.f32.pop %v876
        %vm880 = vweird.f32 %v463
        %v881 = vadd.s32 %v877, 3
        %v882 = vand.u32 %v881, 3
        %vm883 = vcmp.lt.s32.totalorder %v882, 2
        %vm884 = vcmp.eq.s32.totalorder %v882, 0
        %v885 = vxor.u32 %v879, 2147483648
        %v886 = vsel %vm884, %v878, %v885
        %vm887 = vcmp.eq.s32.totalorder %v882, 2
        %v888 = vxor.u32 %v878, 2147483648
        %v889 = vsel %vm887, %v888, %v879
        %v890 = vsel %vm883, %v886, %v889
        %v891 = vsel %vm880, nan, %v890
        %v892 = vand.u32 2147483647, %v464
        %vm893 = vcmp.le.f32.partialorder %v892, 0.7853982
        %vm894 = vcmp.lt.s32.totalorder %v464, 0
        %v895 = vand.u32 %v464, 2139095040
        %v896 = vshrl.u32 %v895, 23
        %v897 = vsub.s32 %v896, 127
        %v898 = vand.u32 2147483647, %v464
        %v899 = vand.u32 %v898, 8388607
        %v900 = vor.u32 %v899, 8388608
        %v901 = vsub.s32 0, %v900
        %v902 = vadd.s32 %v897, 1
        %vm903 = vcmp.gt.s32.totalorder %v902, 0
        %v904 = vsel %vm903, %v902, 0
        %v905 = vshrl.u32 %v904, 5
        %v906 = vand.u32 %v904, 31
        %v907 = vsub.s32 32, %v906
        %v908 = vshrl.u32 683565275, %v907
        %v909 = vshll.u32 683565275, %v906
        %v910 = vshrl.u32 2475754826, %v907
        %v911 = vor.u32 %v909, %v910
        %v912 = vshll.u32 2475754826, %v906
        %v913 = vshrl.u32 2131351028, %v907
        %v914 = vor.u32 %v912, %v913
        %v915 = vshll.u32 2131351028, %v906
        %v916 = vshrl.u32 2102212464, %v907
        %v917 = vor.u32 %v915, %v916
        %v918 = vshll.u32 2102212464, %v906
        %v919 = vshrl.u32 920167782, %v907
        %v920 = vor.u32 %v918, %v919
        %v921 = vshll.u32 920167782, %v906
        %v922 = vshrl.u32 1326507024, %v907
        %v923 = vor.u32 %v921, %v922
        %vm924 = vcmp.lt.s32.totalorder %v905, 1
        %vm925 = vcmp.lt.s32.totalorder %v905, 2
        %vm926 = vcmp.lt.s32.totalorder %v905, 3
        %vm927 = vcmp.lt.s32.totalorder %v905, 4
        %v928 = vsel %vm924, %v908, %v911
        %v929 = vsel %vm927, %v917, 2102212464
        %v930 = vsel %vm926, %v914, %v929
        %v931 = vsel %vm925, %v928, %v930
        %v932 = vsel %vm924, %v911, %v914
        %v933 = vsel %vm927, %v920, 920167782
        %v934 = vsel %vm926, %v917, %v933
        %v935 = vsel %vm925, %v932, %v934
        %v936 = vsel %vm924, %v914, %v917
        %v937 = vsel %vm927, %v923, 1326507024
        %v938 = vsel %vm926, %v920, %v937
        %v939 = vsel %vm925, %v936, %v938
        %v940 = vshll.u32 %v900, 8
        %v941 = vmul.u32.u64.compose %v940, %v939
        %v942 = vextract.low.u32 %v941
        %v943 = vextract.high.u32 %v941
        %v944 = vmul.u32.u64.compose %v940, %v935
        %v945 = vextract.low.u32 %v944
        %v946 = vextract.high.u32 %v944
        %v947 = vmul.u32 %v940, %v931
        %v948 = vadd.s32 %v943, %v945
        %vm949 = vc.u32 %v943, %v945
        %v950 = vadd.s32 %v946, 1
        %v951 = vsel %vm949, %v950, %v946
        %v952 = vadd.s32 %v947, %v951
        %v953 = vadd.s32 %v952, 536870912
        %v954 = vshrl.u32 %v953, 30
        %v955 = vshll.u32 %v954, 30
        %v956 = vsub.s32 %v952, %v955
        %vm957 = vcmp.lt.s32.totalorder %v956, 0
        %v958 = vsub.s32 0, %v956
        %v959 = vsel %vm957, %v958, %v956
        %v960 = vclz %v959
        %v961 = vsub.s32 %v960, 2
        %vm962 = vcmp.gt.s32.totalorder 0, %v961
        %v963 = vsel %vm962, 0, %v961
        %v964 = vsub.s32 32, %v963
        %v965 = vshll.u32 %v956, %v963
        %v966 = vshrl.u32 %v948, %v964
        %v967 = vor.u32 %v965, %v966
        %v968 = vsub.s32 4294967266, %v963
        %v969 = vadd.s32 %v968, 127
        %v970 = vshll.u32 %v969, 23
        %v971 = vor.u32 4788187, %v970
        %v972 = vand.u32 2147483647, %v971
        %v974 = vcvt.s32.f32 %v967
        %v975 = vmul.f32 %v974, %v972
        %v976 = vxor.u32 %v975, 2147483648
        %v977 = vsel %vm894, %v976, %v975
        %v978 = vsub.s32 4, %v954
        %v979 = vsel %vm894, %v978, %v954
        %v980 = vsel %vm893, %v464, %v977
        %v981 = vsel %vm893, 0, %v979
        %v982 = vcosq.f32.pop %v980
        %v983 = vsinq.f32.pop %v980
        %vm984 = vweird.f32 %v464
        %v985 = vadd.s32 %v981, 3
        %v986 = vand.u32 %v985, 3
        %vm987 = vcmp.lt.s32.totalorder %v986, 2
        %vm988 = vcmp.eq.s32.totalorder %v986, 0
        %v989 = vxor.u32 %v983, 2147483648
        %v990 = vsel %vm988, %v982, %v989
        %vm991 = vcmp.eq.s32.totalorder %v986, 2
        %v992 = vxor.u32 %v982, 2147483648
        %v993 = vsel %vm991, %v992, %v983
        %v994 = vsel %vm987, %v990, %v993
        %v995 = vsel %vm984, nan, %v994
        %v996 = vand.u32 2147483647, %v465
        %vm997 = vcmp.le.f32.partialorder %v996, 0.7853982
        %vm998 = vcmp.lt.s32.totalorder %v465, 0
        %v999 = vand.u32 %v465, 2139095040
        %v1000 = vshrl.u32 %v999, 23
        %v1001 = vsub.s32 %v1000, 127
        %v1002 = vand.u32 2147483647, %v465
        %v1003 = vand.u32 %v1002, 8388607
        %v1004 = vor.u32 %v1003, 8388608
        %v1005 = vsub.s32 0, %v1004
        %v1006 = vadd.s32 %v1001, 1
        %vm1007 = vcmp.gt.s32.totalorder %v1006, 0
        %v1008 = vsel %vm1007, %v1006, 0
        %v1009 = vshrl.u32 %v1008, 5
        %v1010 = vand.u32 %v1008, 31
        %v1011 = vsub.s32 32, %v1010
        %v1012 = vshrl.u32 683565275, %v1011
        %v1013 = vshll.u32 683565275, %v1010
        %v1014 = vshrl.u32 2475754826, %v1011
        %v1015 = vor.u32 %v1013, %v1014
        %v1016 = vshll.u32 2475754826, %v1010
        %v1017 = vshrl.u32 2131351028, %v1011
        %v1018 = vor.u32 %v1016, %v1017
        %v1019 = vshll.u32 2131351028, %v1010
        %v1020 = vshrl.u32 2102212464, %v1011
        %v1021 = vor.u32 %v1019, %v1020
        %v1022 = vshll.u32 2102212464, %v1010
        %v1023 = vshrl.u32 920167782, %v1011
        %v1024 = vor.u32 %v1022, %v1023
        %v1025 = vshll.u32 920167782, %v1010
        %v1026 = vshrl.u32 1326507024, %v1011
        %v1027 = vor.u32 %v1025, %v1026
        %vm1028 = vcmp.lt.s32.totalorder %v1009, 1
        %vm1029 = vcmp.lt.s32.totalorder %v1009, 2
        %vm1030 = vcmp.lt.s32.totalorder %v1009, 3
        %vm1031 = vcmp.lt.s32.totalorder %v1009, 4
        %v1032 = vsel %vm1028, %v1012, %v1015
        %v1033 = vsel %vm1031, %v1021, 2102212464
        %v1034 = vsel %vm1030, %v1018, %v1033
        %v1035 = vsel %vm1029, %v1032, %v1034
        %v1036 = vsel %vm1028, %v1015, %v1018
        %v1037 = vsel %vm1031, %v1024, 920167782
        %v1038 = vsel %vm1030, %v1021, %v1037
        %v1039 = vsel %vm1029, %v1036, %v1038
        %v1040 = vsel %vm1028, %v1018, %v1021
        %v1041 = vsel %vm1031, %v1027, 1326507024
        %v1042 = vsel %vm1030, %v1024, %v1041
        %v1043 = vsel %vm1029, %v1040, %v1042
        %v1044 = vshll.u32 %v1004, 8
        %v1045 = vmul.u32.u64.compose %v1044, %v1043
        %v1046 = vextract.low.u32 %v1045
        %v1047 = vextract.high.u32 %v1045
        %v1048 = vmul.u32.u64.compose %v1044, %v1039
        %v1049 = vextract.low.u32 %v1048
        %v1050 = vextract.high.u32 %v1048
        %v1051 = vmul.u32 %v1044, %v1035
        %v1052 = vadd.s32 %v1047, %v1049
        %vm1053 = vc.u32 %v1047, %v1049
        %v1054 = vadd.s32 %v1050, 1
        %v1055 = vsel %vm1053, %v1054, %v1050
        %v1056 = vadd.s32 %v1051, %v1055
        %v1057 = vadd.s32 %v1056, 536870912
        %v1058 = vshrl.u32 %v1057, 30
        %v1059 = vshll.u32 %v1058, 30
        %v1060 = vsub.s32 %v1056, %v1059
        %vm1061 = vcmp.lt.s32.totalorder %v1060, 0
        %v1062 = vsub.s32 0, %v1060
        %v1063 = vsel %vm1061, %v1062, %v1060
        %v1064 = vclz %v1063
        %v1065 = vsub.s32 %v1064, 2
        %vm1066 = vcmp.gt.s32.totalorder 0, %v1065
        %v1067 = vsel %vm1066, 0, %v1065
        %v1068 = vsub.s32 32, %v1067
        %v1069 = vshll.u32 %v1060, %v1067
        %v1070 = vshrl.u32 %v1052, %v1068
        %v1071 = vor.u32 %v1069, %v1070
        %v1072 = vsub.s32 4294967266, %v1067
        %v1073 = vadd.s32 %v1072, 127
        %v1074 = vshll.u32 %v1073, 23
        %v1075 = vor.u32 4788187, %v1074
        %v1076 = vand.u32 2147483647, %v1075
        %v1078 = vcvt.s32.f32 %v1071
        %v1079 = vmul.f32 %v1078, %v1076
        %v1080 = vxor.u32 %v1079, 2147483648
        %v1081 = vsel %vm998, %v1080, %v1079
        %v1082 = vsub.s32 4, %v1058
        %v1083 = vsel %vm998, %v1082, %v1058
        %v1084 = vsel %vm997, %v465, %v1081
        %v1085 = vsel %vm997, 0, %v1083
        %v1086 = vcosq.f32.pop %v1084
        %v1087 = vsinq.f32.pop %v1084
        %vm1088 = vweird.f32 %v465
        %v1089 = vadd.s32 %v1085, 3
        %v1090 = vand.u32 %v1089, 3
        %vm1091 = vcmp.lt.s32.totalorder %v1090, 2
        %vm1092 = vcmp.eq.s32.totalorder %v1090, 0
        %v1093 = vxor.u32 %v1087, 2147483648
        %v1094 = vsel %vm1092, %v1086, %v1093
        %vm1095 = vcmp.eq.s32.totalorder %v1090, 2
        %v1096 = vxor.u32 %v1086, 2147483648
        %v1097 = vsel %vm1095, %v1096, %v1087
        %v1098 = vsel %vm1091, %v1094, %v1097
        %v1099 = vsel %vm1088, nan, %v1098
        %v1100 = vand.u32 2147483647, %v466
        %vm1101 = vcmp.le.f32.partialorder %v1100, 0.7853982
        %vm1102 = vcmp.lt.s32.totalorder %v466, 0
        %v1103 = vand.u32 %v466, 2139095040
        %v1104 = vshrl.u32 %v1103, 23
        %v1105 = vsub.s32 %v1104, 127
        %v1106 = vand.u32 2147483647, %v466
        %v1107 = vand.u32 %v1106, 8388607
        %v1108 = vor.u32 %v1107, 8388608
        %v1109 = vsub.s32 0, %v1108
        %v1110 = vadd.s32 %v1105, 1
        %vm1111 = vcmp.gt.s32.totalorder %v1110, 0
        %v1112 = vsel %vm1111, %v1110, 0
        %v1113 = vshrl.u32 %v1112, 5
        %v1114 = vand.u32 %v1112, 31
        %v1115 = vsub.s32 32, %v1114
        %v1116 = vshrl.u32 683565275, %v1115
        %v1117 = vshll.u32 683565275, %v1114
        %v1118 = vshrl.u32 2475754826, %v1115
        %v1119 = vor.u32 %v1117, %v1118
        %v1120 = vshll.u32 2475754826, %v1114
        %v1121 = vshrl.u32 2131351028, %v1115
        %v1122 = vor.u32 %v1120, %v1121
        %v1123 = vshll.u32 2131351028, %v1114
        %v1124 = vshrl.u32 2102212464, %v1115
        %v1125 = vor.u32 %v1123, %v1124
        %v1126 = vshll.u32 2102212464, %v1114
        %v1127 = vshrl.u32 920167782, %v1115
        %v1128 = vor.u32 %v1126, %v1127
        %v1129 = vshll.u32 920167782, %v1114
        %v1130 = vshrl.u32 1326507024, %v1115
        %v1131 = vor.u32 %v1129, %v1130
        %vm1132 = vcmp.lt.s32.totalorder %v1113, 1
        %vm1133 = vcmp.lt.s32.totalorder %v1113, 2
        %vm1134 = vcmp.lt.s32.totalorder %v1113, 3
        %vm1135 = vcmp.lt.s32.totalorder %v1113, 4
        %v1136 = vsel %vm1132, %v1116, %v1119
        %v1137 = vsel %vm1135, %v1125, 2102212464
        %v1138 = vsel %vm1134, %v1122, %v1137
        %v1139 = vsel %vm1133, %v1136, %v1138
        %v1140 = vsel %vm1132, %v1119, %v1122
        %v1141 = vsel %vm1135, %v1128, 920167782
        %v1142 = vsel %vm1134, %v1125, %v1141
        %v1143 = vsel %vm1133, %v1140, %v1142
        %v1144 = vsel %vm1132, %v1122, %v1125
        %v1145 = vsel %vm1135, %v1131, 1326507024
        %v1146 = vsel %vm1134, %v1128, %v1145
        %v1147 = vsel %vm1133, %v1144, %v1146
        %v1148 = vshll.u32 %v1108, 8
        %v1149 = vmul.u32.u64.compose %v1148, %v1147
        %v1150 = vextract.low.u32 %v1149
        %v1151 = vextract.high.u32 %v1149
        %v1152 = vmul.u32.u64.compose %v1148, %v1143
        %v1153 = vextract.low.u32 %v1152
        %v1154 = vextract.high.u32 %v1152
        %v1155 = vmul.u32 %v1148, %v1139
        %v1156 = vadd.s32 %v1151, %v1153
        %vm1157 = vc.u32 %v1151, %v1153
        %v1158 = vadd.s32 %v1154, 1
        %v1159 = vsel %vm1157, %v1158, %v1154
        %v1160 = vadd.s32 %v1155, %v1159
        %v1161 = vadd.s32 %v1160, 536870912
        %v1162 = vshrl.u32 %v1161, 30
        %v1163 = vshll.u32 %v1162, 30
        %v1164 = vsub.s32 %v1160, %v1163
        %vm1165 = vcmp.lt.s32.totalorder %v1164, 0
        %v1166 = vsub.s32 0, %v1164
        %v1167 = vsel %vm1165, %v1166, %v1164
        %v1168 = vclz %v1167
        %v1169 = vsub.s32 %v1168, 2
        %vm1170 = vcmp.gt.s32.totalorder 0, %v1169
        %v1171 = vsel %vm1170, 0, %v1169
        %v1172 = vsub.s32 32, %v1171
        %v1173 = vshll.u32 %v1164, %v1171
        %v1174 = vshrl.u32 %v1156, %v1172
        %v1175 = vor.u32 %v1173, %v1174
        %v1176 = vsub.s32 4294967266, %v1171
        %v1177 = vadd.s32 %v1176, 127
        %v1178 = vshll.u32 %v1177, 23
        %v1179 = vor.u32 4788187, %v1178
        %v1180 = vand.u32 2147483647, %v1179
        %v1182 = vcvt.s32.f32 %v1175
        %v1183 = vmul.f32 %v1182, %v1180
        %v1184 = vxor.u32 %v1183, 2147483648
        %v1185 = vsel %vm1102, %v1184, %v1183
        %v1186 = vsub.s32 4, %v1162
        %v1187 = vsel %vm1102, %v1186, %v1162
        %v1188 = vsel %vm1101, %v466, %v1185
        %v1189 = vsel %vm1101, 0, %v1187
        %v1190 = vcosq.f32.pop %v1188
        %v1191 = vsinq.f32.pop %v1188
        %vm1192 = vweird.f32 %v466
        %v1193 = vadd.s32 %v1189, 3
        %v1194 = vand.u32 %v1193, 3
        %vm1195 = vcmp.lt.s32.totalorder %v1194, 2
        %vm1196 = vcmp.eq.s32.totalorder %v1194, 0
        %v1197 = vxor.u32 %v1191, 2147483648
        %v1198 = vsel %vm1196, %v1190, %v1197
        %vm1199 = vcmp.eq.s32.totalorder %v1194, 2
        %v1200 = vxor.u32 %v1190, 2147483648
        %v1201 = vsel %vm1199, %v1200, %v1191
        %v1202 = vsel %vm1195, %v1198, %v1201
        %v1203 = vsel %vm1192, nan, %v1202
        %v1204 = vand.u32 2147483647, %v467
        %vm1205 = vcmp.le.f32.partialorder %v1204, 0.7853982
        %vm1206 = vcmp.lt.s32.totalorder %v467, 0
        %v1207 = vand.u32 %v467, 2139095040
        %v1208 = vshrl.u32 %v1207, 23
        %v1209 = vsub.s32 %v1208, 127
        %v1210 = vand.u32 2147483647, %v467
        %v1211 = vand.u32 %v1210, 8388607
        %v1212 = vor.u32 %v1211, 8388608
        %v1213 = vsub.s32 0, %v1212
        %v1214 = vadd.s32 %v1209, 1
        %vm1215 = vcmp.gt.s32.totalorder %v1214, 0
        %v1216 = vsel %vm1215, %v1214, 0
        %v1217 = vshrl.u32 %v1216, 5
        %v1218 = vand.u32 %v1216, 31
        %v1219 = vsub.s32 32, %v1218
        %v1220 = vshrl.u32 683565275, %v1219
        %v1221 = vshll.u32 683565275, %v1218
        %v1222 = vshrl.u32 2475754826, %v1219
        %v1223 = vor.u32 %v1221, %v1222
        %v1224 = vshll.u32 2475754826, %v1218
        %v1225 = vshrl.u32 2131351028, %v1219
        %v1226 = vor.u32 %v1224, %v1225
        %v1227 = vshll.u32 2131351028, %v1218
        %v1228 = vshrl.u32 2102212464, %v1219
        %v1229 = vor.u32 %v1227, %v1228
        %v1230 = vshll.u32 2102212464, %v1218
        %v1231 = vshrl.u32 920167782, %v1219
        %v1232 = vor.u32 %v1230, %v1231
        %v1233 = vshll.u32 920167782, %v1218
        %v1234 = vshrl.u32 1326507024, %v1219
        %v1235 = vor.u32 %v1233, %v1234
        %vm1236 = vcmp.lt.s32.totalorder %v1217, 1
        %vm1237 = vcmp.lt.s32.totalorder %v1217, 2
        %vm1238 = vcmp.lt.s32.totalorder %v1217, 3
        %vm1239 = vcmp.lt.s32.totalorder %v1217, 4
        %v1240 = vsel %vm1236, %v1220, %v1223
        %v1241 = vsel %vm1239, %v1229, 2102212464
        %v1242 = vsel %vm1238, %v1226, %v1241
        %v1243 = vsel %vm1237, %v1240, %v1242
        %v1244 = vsel %vm1236, %v1223, %v1226
        %v1245 = vsel %vm1239, %v1232, 920167782
        %v1246 = vsel %vm1238, %v1229, %v1245
        %v1247 = vsel %vm1237, %v1244, %v1246
        %v1248 = vsel %vm1236, %v1226, %v1229
        %v1249 = vsel %vm1239, %v1235, 1326507024
        %v1250 = vsel %vm1238, %v1232, %v1249
        %v1251 = vsel %vm1237, %v1248, %v1250
        %v1252 = vshll.u32 %v1212, 8
        %v1253 = vmul.u32.u64.compose %v1252, %v1251
        %v1254 = vextract.low.u32 %v1253
        %v1255 = vextract.high.u32 %v1253
        %v1256 = vmul.u32.u64.compose %v1252, %v1247
        %v1257 = vextract.low.u32 %v1256
        %v1258 = vextract.high.u32 %v1256
        %v1259 = vmul.u32 %v1252, %v1243
        %v1260 = vadd.s32 %v1255, %v1257
        %vm1261 = vc.u32 %v1255, %v1257
        %v1262 = vadd.s32 %v1258, 1
        %v1263 = vsel %vm1261, %v1262, %v1258
        %v1264 = vadd.s32 %v1259, %v1263
        %v1265 = vadd.s32 %v1264, 536870912
        %v1266 = vshrl.u32 %v1265, 30
        %v1267 = vshll.u32 %v1266, 30
        %v1268 = vsub.s32 %v1264, %v1267
        %vm1269 = vcmp.lt.s32.totalorder %v1268, 0
        %v1270 = vsub.s32 0, %v1268
        %v1271 = vsel %vm1269, %v1270, %v1268
        %v1272 = vclz %v1271
        %v1273 = vsub.s32 %v1272, 2
        %vm1274 = vcmp.gt.s32.totalorder 0, %v1273
        %v1275 = vsel %vm1274, 0, %v1273
        %v1276 = vsub.s32 32, %v1275
        %v1277 = vshll.u32 %v1268, %v1275
        %v1278 = vshrl.u32 %v1260, %v1276
        %v1279 = vor.u32 %v1277, %v1278
        %v1280 = vsub.s32 4294967266, %v1275
        %v1281 = vadd.s32 %v1280, 127
        %v1282 = vshll.u32 %v1281, 23
        %v1283 = vor.u32 4788187, %v1282
        %v1284 = vand.u32 2147483647, %v1283
        %v1286 = vcvt.s32.f32 %v1279
        %v1287 = vmul.f32 %v1286, %v1284
        %v1288 = vxor.u32 %v1287, 2147483648
        %v1289 = vsel %vm1206, %v1288, %v1287
        %v1290 = vsub.s32 4, %v1266
        %v1291 = vsel %vm1206, %v1290, %v1266
        %v1292 = vsel %vm1205, %v467, %v1289
        %v1293 = vsel %vm1205, 0, %v1291
        %v1294 = vcosq.f32.pop %v1292
        %v1295 = vsinq.f32.pop %v1292
        %vm1296 = vweird.f32 %v467
        %v1297 = vadd.s32 %v1293, 3
        %v1298 = vand.u32 %v1297, 3
        %vm1299 = vcmp.lt.s32.totalorder %v1298, 2
        %vm1300 = vcmp.eq.s32.totalorder %v1298, 0
        %v1301 = vxor.u32 %v1295, 2147483648
        %v1302 = vsel %vm1300, %v1294, %v1301
        %vm1303 = vcmp.eq.s32.totalorder %v1298, 2
        %v1304 = vxor.u32 %v1294, 2147483648
        %v1305 = vsel %vm1303, %v1304, %v1295
        %v1306 = vsel %vm1299, %v1302, %v1305
        %v1307 = vsel %vm1296, nan, %v1306
        %v1308 = vand.u32 2147483647, %v468
        %vm1309 = vcmp.le.f32.partialorder %v1308, 0.7853982
        %vm1310 = vcmp.lt.s32.totalorder %v468, 0
        %v1311 = vand.u32 %v468, 2139095040
        %v1312 = vshrl.u32 %v1311, 23
        %v1313 = vsub.s32 %v1312, 127
        %v1314 = vand.u32 2147483647, %v468
        %v1315 = vand.u32 %v1314, 8388607
        %v1316 = vor.u32 %v1315, 8388608
        %v1317 = vsub.s32 0, %v1316
        %v1318 = vadd.s32 %v1313, 1
        %vm1319 = vcmp.gt.s32.totalorder %v1318, 0
        %v1320 = vsel %vm1319, %v1318, 0
        %v1321 = vshrl.u32 %v1320, 5
        %v1322 = vand.u32 %v1320, 31
        %v1323 = vsub.s32 32, %v1322
        %v1324 = vshrl.u32 683565275, %v1323
        %v1325 = vshll.u32 683565275, %v1322
        %v1326 = vshrl.u32 2475754826, %v1323
        %v1327 = vor.u32 %v1325, %v1326
        %v1328 = vshll.u32 2475754826, %v1322
        %v1329 = vshrl.u32 2131351028, %v1323
        %v1330 = vor.u32 %v1328, %v1329
        %v1331 = vshll.u32 2131351028, %v1322
        %v1332 = vshrl.u32 2102212464, %v1323
        %v1333 = vor.u32 %v1331, %v1332
        %v1334 = vshll.u32 2102212464, %v1322
        %v1335 = vshrl.u32 920167782, %v1323
        %v1336 = vor.u32 %v1334, %v1335
        %v1337 = vshll.u32 920167782, %v1322
        %v1338 = vshrl.u32 1326507024, %v1323
        %v1339 = vor.u32 %v1337, %v1338
        %vm1340 = vcmp.lt.s32.totalorder %v1321, 1
        %vm1341 = vcmp.lt.s32.totalorder %v1321, 2
        %vm1342 = vcmp.lt.s32.totalorder %v1321, 3
        %vm1343 = vcmp.lt.s32.totalorder %v1321, 4
        %v1344 = vsel %vm1340, %v1324, %v1327
        %v1345 = vsel %vm1343, %v1333, 2102212464
        %v1346 = vsel %vm1342, %v1330, %v1345
        %v1347 = vsel %vm1341, %v1344, %v1346
        %v1348 = vsel %vm1340, %v1327, %v1330
        %v1349 = vsel %vm1343, %v1336, 920167782
        %v1350 = vsel %vm1342, %v1333, %v1349
        %v1351 = vsel %vm1341, %v1348, %v1350
        %v1352 = vsel %vm1340, %v1330, %v1333
        %v1353 = vsel %vm1343, %v1339, 1326507024
        %v1354 = vsel %vm1342, %v1336, %v1353
        %v1355 = vsel %vm1341, %v1352, %v1354
        %v1356 = vshll.u32 %v1316, 8
        %v1357 = vmul.u32.u64.compose %v1356, %v1355
        %v1358 = vextract.low.u32 %v1357
        %v1359 = vextract.high.u32 %v1357
        %v1360 = vmul.u32.u64.compose %v1356, %v1351
        %v1361 = vextract.low.u32 %v1360
        %v1362 = vextract.high.u32 %v1360
        %v1363 = vmul.u32 %v1356, %v1347
        %v1364 = vadd.s32 %v1359, %v1361
        %vm1365 = vc.u32 %v1359, %v1361
        %v1366 = vadd.s32 %v1362, 1
        %v1367 = vsel %vm1365, %v1366, %v1362
        %v1368 = vadd.s32 %v1363, %v1367
        %v1369 = vadd.s32 %v1368, 536870912
        %v1370 = vshrl.u32 %v1369, 30
        %v1371 = vshll.u32 %v1370, 30
        %v1372 = vsub.s32 %v1368, %v1371
        %vm1373 = vcmp.lt.s32.totalorder %v1372, 0
        %v1374 = vsub.s32 0, %v1372
        %v1375 = vsel %vm1373, %v1374, %v1372
        %v1376 = vclz %v1375
        %v1377 = vsub.s32 %v1376, 2
        %vm1378 = vcmp.gt.s32.totalorder 0, %v1377
        %v1379 = vsel %vm1378, 0, %v1377
        %v1380 = vsub.s32 32, %v1379
        %v1381 = vshll.u32 %v1372, %v1379
        %v1382 = vshrl.u32 %v1364, %v1380
        %v1383 = vor.u32 %v1381, %v1382
        %v1384 = vsub.s32 4294967266, %v1379
        %v1385 = vadd.s32 %v1384, 127
        %v1386 = vshll.u32 %v1385, 23
        %v1387 = vor.u32 4788187, %v1386
        %v1388 = vand.u32 2147483647, %v1387
        %v1390 = vcvt.s32.f32 %v1383
        %v1391 = vmul.f32 %v1390, %v1388
        %v1392 = vxor.u32 %v1391, 2147483648
        %v1393 = vsel %vm1310, %v1392, %v1391
        %v1394 = vsub.s32 4, %v1370
        %v1395 = vsel %vm1310, %v1394, %v1370
        %v1396 = vsel %vm1309, %v468, %v1393
        %v1397 = vsel %vm1309, 0, %v1395
        %v1398 = vcosq.f32.pop %v1396
        %v1399 = vsinq.f32.pop %v1396
        %vm1400 = vweird.f32 %v468
        %v1401 = vadd.s32 %v1397, 3
        %v1402 = vand.u32 %v1401, 3
        %vm1403 = vcmp.lt.s32.totalorder %v1402, 2
        %vm1404 = vcmp.eq.s32.totalorder %v1402, 0
        %v1405 = vxor.u32 %v1399, 2147483648
        %v1406 = vsel %vm1404, %v1398, %v1405
        %vm1407 = vcmp.eq.s32.totalorder %v1402, 2
        %v1408 = vxor.u32 %v1398, 2147483648
        %v1409 = vsel %vm1407, %v1408, %v1399
        %v1410 = vsel %vm1403, %v1406, %v1409
        %v1411 = vsel %vm1400, nan, %v1410
        %v1412 = vand.u32 2147483647, %v469
        %vm1413 = vcmp.le.f32.partialorder %v1412, 0.7853982
        %vm1414 = vcmp.lt.s32.totalorder %v469, 0
        %v1415 = vand.u32 %v469, 2139095040
        %v1416 = vshrl.u32 %v1415, 23
        %v1417 = vsub.s32 %v1416, 127
        %v1418 = vand.u32 2147483647, %v469
        %v1419 = vand.u32 %v1418, 8388607
        %v1420 = vor.u32 %v1419, 8388608
        %v1421 = vsub.s32 0, %v1420
        %v1422 = vadd.s32 %v1417, 1
        %vm1423 = vcmp.gt.s32.totalorder %v1422, 0
        %v1424 = vsel %vm1423, %v1422, 0
        %v1425 = vshrl.u32 %v1424, 5
        %v1426 = vand.u32 %v1424, 31
        %v1427 = vsub.s32 32, %v1426
        %v1428 = vshrl.u32 683565275, %v1427
        %v1429 = vshll.u32 683565275, %v1426
        %v1430 = vshrl.u32 2475754826, %v1427
        %v1431 = vor.u32 %v1429, %v1430
        %v1432 = vshll.u32 2475754826, %v1426
        %v1433 = vshrl.u32 2131351028, %v1427
        %v1434 = vor.u32 %v1432, %v1433
        %v1435 = vshll.u32 2131351028, %v1426
        %v1436 = vshrl.u32 2102212464, %v1427
        %v1437 = vor.u32 %v1435, %v1436
        %v1438 = vshll.u32 2102212464, %v1426
        %v1439 = vshrl.u32 920167782, %v1427
        %v1440 = vor.u32 %v1438, %v1439
        %v1441 = vshll.u32 920167782, %v1426
        %v1442 = vshrl.u32 1326507024, %v1427
        %v1443 = vor.u32 %v1441, %v1442
        %vm1444 = vcmp.lt.s32.totalorder %v1425, 1
        %vm1445 = vcmp.lt.s32.totalorder %v1425, 2
        %vm1446 = vcmp.lt.s32.totalorder %v1425, 3
        %vm1447 = vcmp.lt.s32.totalorder %v1425, 4
        %v1448 = vsel %vm1444, %v1428, %v1431
        %v1449 = vsel %vm1447, %v1437, 2102212464
        %v1450 = vsel %vm1446, %v1434, %v1449
        %v1451 = vsel %vm1445, %v1448, %v1450
        %v1452 = vsel %vm1444, %v1431, %v1434
        %v1453 = vsel %vm1447, %v1440, 920167782
        %v1454 = vsel %vm1446, %v1437, %v1453
        %v1455 = vsel %vm1445, %v1452, %v1454
        %v1456 = vsel %vm1444, %v1434, %v1437
        %v1457 = vsel %vm1447, %v1443, 1326507024
        %v1458 = vsel %vm1446, %v1440, %v1457
        %v1459 = vsel %vm1445, %v1456, %v1458
        %v1460 = vshll.u32 %v1420, 8
        %v1461 = vmul.u32.u64.compose %v1460, %v1459
        %v1462 = vextract.low.u32 %v1461
        %v1463 = vextract.high.u32 %v1461
        %v1464 = vmul.u32.u64.compose %v1460, %v1455
        %v1465 = vextract.low.u32 %v1464
        %v1466 = vextract.high.u32 %v1464
        %v1467 = vmul.u32 %v1460, %v1451
        %v1468 = vadd.s32 %v1463, %v1465
        %vm1469 = vc.u32 %v1463, %v1465
        %v1470 = vadd.s32 %v1466, 1
        %v1471 = vsel %vm1469, %v1470, %v1466
        %v1472 = vadd.s32 %v1467, %v1471
        %v1473 = vadd.s32 %v1472, 536870912
        %v1474 = vshrl.u32 %v1473, 30
        %v1475 = vshll.u32 %v1474, 30
        %v1476 = vsub.s32 %v1472, %v1475
        %vm1477 = vcmp.lt.s32.totalorder %v1476, 0
        %v1478 = vsub.s32 0, %v1476
        %v1479 = vsel %vm1477, %v1478, %v1476
        %v1480 = vclz %v1479
        %v1481 = vsub.s32 %v1480, 2
        %vm1482 = vcmp.gt.s32.totalorder 0, %v1481
        %v1483 = vsel %vm1482, 0, %v1481
        %v1484 = vsub.s32 32, %v1483
        %v1485 = vshll.u32 %v1476, %v1483
        %v1486 = vshrl.u32 %v1468, %v1484
        %v1487 = vor.u32 %v1485, %v1486
        %v1488 = vsub.s32 4294967266, %v1483
        %v1489 = vadd.s32 %v1488, 127
        %v1490 = vshll.u32 %v1489, 23
        %v1491 = vor.u32 4788187, %v1490
        %v1492 = vand.u32 2147483647, %v1491
        %v1494 = vcvt.s32.f32 %v1487
        %v1495 = vmul.f32 %v1494, %v1492
        %v1496 = vxor.u32 %v1495, 2147483648
        %v1497 = vsel %vm1414, %v1496, %v1495
        %v1498 = vsub.s32 4, %v1474
        %v1499 = vsel %vm1414, %v1498, %v1474
        %v1500 = vsel %vm1413, %v469, %v1497
        %v1501 = vsel %vm1413, 0, %v1499
        %v1502 = vcosq.f32.pop %v1500
        %v1503 = vsinq.f32.pop %v1500
        %vm1504 = vweird.f32 %v469
        %v1505 = vadd.s32 %v1501, 3
        %v1506 = vand.u32 %v1505, 3
        %vm1507 = vcmp.lt.s32.totalorder %v1506, 2
        %vm1508 = vcmp.eq.s32.totalorder %v1506, 0
        %v1509 = vxor.u32 %v1503, 2147483648
        %v1510 = vsel %vm1508, %v1502, %v1509
        %vm1511 = vcmp.eq.s32.totalorder %v1506, 2
        %v1512 = vxor.u32 %v1502, 2147483648
        %v1513 = vsel %vm1511, %v1512, %v1503
        %v1514 = vsel %vm1507, %v1510, %v1513
        %v1515 = vsel %vm1504, nan, %v1514
        %v1516 = vand.u32 2147483647, %v470
        %vm1517 = vcmp.le.f32.partialorder %v1516, 0.7853982
        %vm1518 = vcmp.lt.s32.totalorder %v470, 0
        %v1519 = vand.u32 %v470, 2139095040
        %v1520 = vshrl.u32 %v1519, 23
        %v1521 = vsub.s32 %v1520, 127
        %v1522 = vand.u32 2147483647, %v470
        %v1523 = vand.u32 %v1522, 8388607
        %v1524 = vor.u32 %v1523, 8388608
        %v1525 = vsub.s32 0, %v1524
        %v1526 = vadd.s32 %v1521, 1
        %vm1527 = vcmp.gt.s32.totalorder %v1526, 0
        %v1528 = vsel %vm1527, %v1526, 0
        %v1529 = vshrl.u32 %v1528, 5
        %v1530 = vand.u32 %v1528, 31
        %v1531 = vsub.s32 32, %v1530
        %v1532 = vshrl.u32 683565275, %v1531
        %v1533 = vshll.u32 683565275, %v1530
        %v1534 = vshrl.u32 2475754826, %v1531
        %v1535 = vor.u32 %v1533, %v1534
        %v1536 = vshll.u32 2475754826, %v1530
        %v1537 = vshrl.u32 2131351028, %v1531
        %v1538 = vor.u32 %v1536, %v1537
        %v1539 = vshll.u32 2131351028, %v1530
        %v1540 = vshrl.u32 2102212464, %v1531
        %v1541 = vor.u32 %v1539, %v1540
        %v1542 = vshll.u32 2102212464, %v1530
        %v1543 = vshrl.u32 920167782, %v1531
        %v1544 = vor.u32 %v1542, %v1543
        %v1545 = vshll.u32 920167782, %v1530
        %v1546 = vshrl.u32 1326507024, %v1531
        %v1547 = vor.u32 %v1545, %v1546
        %vm1548 = vcmp.lt.s32.totalorder %v1529, 1
        %vm1549 = vcmp.lt.s32.totalorder %v1529, 2
        %vm1550 = vcmp.lt.s32.totalorder %v1529, 3
        %vm1551 = vcmp.lt.s32.totalorder %v1529, 4
        %v1552 = vsel %vm1548, %v1532, %v1535
        %v1553 = vsel %vm1551, %v1541, 2102212464
        %v1554 = vsel %vm1550, %v1538, %v1553
        %v1555 = vsel %vm1549, %v1552, %v1554
        %v1556 = vsel %vm1548, %v1535, %v1538
        %v1557 = vsel %vm1551, %v1544, 920167782
        %v1558 = vsel %vm1550, %v1541, %v1557
        %v1559 = vsel %vm1549, %v1556, %v1558
        %v1560 = vsel %vm1548, %v1538, %v1541
        %v1561 = vsel %vm1551, %v1547, 1326507024
        %v1562 = vsel %vm1550, %v1544, %v1561
        %v1563 = vsel %vm1549, %v1560, %v1562
        %v1564 = vshll.u32 %v1524, 8
        %v1565 = vmul.u32.u64.compose %v1564, %v1563
        %v1566 = vextract.low.u32 %v1565
        %v1567 = vextract.high.u32 %v1565
        %v1568 = vmul.u32.u64.compose %v1564, %v1559
        %v1569 = vextract.low.u32 %v1568
        %v1570 = vextract.high.u32 %v1568
        %v1571 = vmul.u32 %v1564, %v1555
        %v1572 = vadd.s32 %v1567, %v1569
        %vm1573 = vc.u32 %v1567, %v1569
        %v1574 = vadd.s32 %v1570, 1
        %v1575 = vsel %vm1573, %v1574, %v1570
        %v1576 = vadd.s32 %v1571, %v1575
        %v1577 = vadd.s32 %v1576, 536870912
        %v1578 = vshrl.u32 %v1577, 30
        %v1579 = vshll.u32 %v1578, 30
        %v1580 = vsub.s32 %v1576, %v1579
        %vm1581 = vcmp.lt.s32.totalorder %v1580, 0
        %v1582 = vsub.s32 0, %v1580
        %v1583 = vsel %vm1581, %v1582, %v1580
        %v1584 = vclz %v1583
        %v1585 = vsub.s32 %v1584, 2
        %vm1586 = vcmp.gt.s32.totalorder 0, %v1585
        %v1587 = vsel %vm1586, 0, %v1585
        %v1588 = vsub.s32 32, %v1587
        %v1589 = vshll.u32 %v1580, %v1587
        %v1590 = vshrl.u32 %v1572, %v1588
        %v1591 = vor.u32 %v1589, %v1590
        %v1592 = vsub.s32 4294967266, %v1587
        %v1593 = vadd.s32 %v1592, 127
        %v1594 = vshll.u32 %v1593, 23
        %v1595 = vor.u32 4788187, %v1594
        %v1596 = vand.u32 2147483647, %v1595
        %v1598 = vcvt.s32.f32 %v1591
        %v1599 = vmul.f32 %v1598, %v1596
        %v1600 = vxor.u32 %v1599, 2147483648
        %v1601 = vsel %vm1518, %v1600, %v1599
        %v1602 = vsub.s32 4, %v1578
        %v1603 = vsel %vm1518, %v1602, %v1578
        %v1604 = vsel %vm1517, %v470, %v1601
        %v1605 = vsel %vm1517, 0, %v1603
        %v1606 = vcosq.f32.pop %v1604
        %v1607 = vsinq.f32.pop %v1604
        %vm1608 = vweird.f32 %v470
        %v1609 = vadd.s32 %v1605, 3
        %v1610 = vand.u32 %v1609, 3
        %vm1611 = vcmp.lt.s32.totalorder %v1610, 2
        %vm1612 = vcmp.eq.s32.totalorder %v1610, 0
        %v1613 = vxor.u32 %v1607, 2147483648
        %v1614 = vsel %vm1612, %v1606, %v1613
        %vm1615 = vcmp.eq.s32.totalorder %v1610, 2
        %v1616 = vxor.u32 %v1606, 2147483648
        %v1617 = vsel %vm1615, %v1616, %v1607
        %v1618 = vsel %vm1611, %v1614, %v1617
        %v1619 = vsel %vm1608, nan, %v1618
        %v1620 = vand.u32 2147483647, %v471
        %vm1621 = vcmp.le.f32.partialorder %v1620, 0.7853982
        %vm1622 = vcmp.lt.s32.totalorder %v471, 0
        %v1623 = vand.u32 %v471, 2139095040
        %v1624 = vshrl.u32 %v1623, 23
        %v1625 = vsub.s32 %v1624, 127
        %v1626 = vand.u32 2147483647, %v471
        %v1627 = vand.u32 %v1626, 8388607
        %v1628 = vor.u32 %v1627, 8388608
        %v1629 = vsub.s32 0, %v1628
        %v1630 = vadd.s32 %v1625, 1
        %vm1631 = vcmp.gt.s32.totalorder %v1630, 0
        %v1632 = vsel %vm1631, %v1630, 0
        %v1633 = vshrl.u32 %v1632, 5
        %v1634 = vand.u32 %v1632, 31
        %v1635 = vsub.s32 32, %v1634
        %v1636 = vshrl.u32 683565275, %v1635
        %v1637 = vshll.u32 683565275, %v1634
        %v1638 = vshrl.u32 2475754826, %v1635
        %v1639 = vor.u32 %v1637, %v1638
        %v1640 = vshll.u32 2475754826, %v1634
        %v1641 = vshrl.u32 2131351028, %v1635
        %v1642 = vor.u32 %v1640, %v1641
        %v1643 = vshll.u32 2131351028, %v1634
        %v1644 = vshrl.u32 2102212464, %v1635
        %v1645 = vor.u32 %v1643, %v1644
        %v1646 = vshll.u32 2102212464, %v1634
        %v1647 = vshrl.u32 920167782, %v1635
        %v1648 = vor.u32 %v1646, %v1647
        %v1649 = vshll.u32 920167782, %v1634
        %v1650 = vshrl.u32 1326507024, %v1635
        %v1651 = vor.u32 %v1649, %v1650
        %vm1652 = vcmp.lt.s32.totalorder %v1633, 1
        %vm1653 = vcmp.lt.s32.totalorder %v1633, 2
        %vm1654 = vcmp.lt.s32.totalorder %v1633, 3
        %vm1655 = vcmp.lt.s32.totalorder %v1633, 4
        %v1656 = vsel %vm1652, %v1636, %v1639
        %v1657 = vsel %vm1655, %v1645, 2102212464
        %v1658 = vsel %vm1654, %v1642, %v1657
        %v1659 = vsel %vm1653, %v1656, %v1658
        %v1660 = vsel %vm1652, %v1639, %v1642
        %v1661 = vsel %vm1655, %v1648, 920167782
        %v1662 = vsel %vm1654, %v1645, %v1661
        %v1663 = vsel %vm1653, %v1660, %v1662
        %v1664 = vsel %vm1652, %v1642, %v1645
        %v1665 = vsel %vm1655, %v1651, 1326507024
        %v1666 = vsel %vm1654, %v1648, %v1665
        %v1667 = vsel %vm1653, %v1664, %v1666
        %v1668 = vshll.u32 %v1628, 8
        %v1669 = vmul.u32.u64.compose %v1668, %v1667
        %v1670 = vextract.low.u32 %v1669
        %v1671 = vextract.high.u32 %v1669
        %v1672 = vmul.u32.u64.compose %v1668, %v1663
        %v1673 = vextract.low.u32 %v1672
        %v1674 = vextract.high.u32 %v1672
        %v1675 = vmul.u32 %v1668, %v1659
        %v1676 = vadd.s32 %v1671, %v1673
        %vm1677 = vc.u32 %v1671, %v1673
        %v1678 = vadd.s32 %v1674, 1
        %v1679 = vsel %vm1677, %v1678, %v1674
        %v1680 = vadd.s32 %v1675, %v1679
        %v1681 = vadd.s32 %v1680, 536870912
        %v1682 = vshrl.u32 %v1681, 30
        %v1683 = vshll.u32 %v1682, 30
        %v1684 = vsub.s32 %v1680, %v1683
        %vm1685 = vcmp.lt.s32.totalorder %v1684, 0
        %v1686 = vsub.s32 0, %v1684
        %v1687 = vsel %vm1685, %v1686, %v1684
        %v1688 = vclz %v1687
        %v1689 = vsub.s32 %v1688, 2
        %vm1690 = vcmp.gt.s32.totalorder 0, %v1689
        %v1691 = vsel %vm1690, 0, %v1689
        %v1692 = vsub.s32 32, %v1691
        %v1693 = vshll.u32 %v1684, %v1691
        %v1694 = vshrl.u32 %v1676, %v1692
        %v1695 = vor.u32 %v1693, %v1694
        %v1696 = vsub.s32 4294967266, %v1691
        %v1697 = vadd.s32 %v1696, 127
        %v1698 = vshll.u32 %v1697, 23
        %v1699 = vor.u32 4788187, %v1698
        %v1700 = vand.u32 2147483647, %v1699
        %v1702 = vcvt.s32.f32 %v1695
        %v1703 = vmul.f32 %v1702, %v1700
        %v1704 = vxor.u32 %v1703, 2147483648
        %v1705 = vsel %vm1622, %v1704, %v1703
        %v1706 = vsub.s32 4, %v1682
        %v1707 = vsel %vm1622, %v1706, %v1682
        %v1708 = vsel %vm1621, %v471, %v1705
        %v1709 = vsel %vm1621, 0, %v1707
        %v1710 = vcosq.f32.pop %v1708
        %v1711 = vsinq.f32.pop %v1708
        %vm1712 = vweird.f32 %v471
        %v1713 = vadd.s32 %v1709, 3
        %v1714 = vand.u32 %v1713, 3
        %vm1715 = vcmp.lt.s32.totalorder %v1714, 2
        %vm1716 = vcmp.eq.s32.totalorder %v1714, 0
        %v1717 = vxor.u32 %v1711, 2147483648
        %v1718 = vsel %vm1716, %v1710, %v1717
        %vm1719 = vcmp.eq.s32.totalorder %v1714, 2
        %v1720 = vxor.u32 %v1710, 2147483648
        %v1721 = vsel %vm1719, %v1720, %v1711
        %v1722 = vsel %vm1715, %v1718, %v1721
        %v1723 = vsel %vm1712, nan, %v1722
        %v1724 = vand.u32 2147483647, %v472
        %vm1725 = vcmp.le.f32.partialorder %v1724, 0.7853982
        %vm1726 = vcmp.lt.s32.totalorder %v472, 0
        %v1727 = vand.u32 %v472, 2139095040
        %v1728 = vshrl.u32 %v1727, 23
        %v1729 = vsub.s32 %v1728, 127
        %v1730 = vand.u32 2147483647, %v472
        %v1731 = vand.u32 %v1730, 8388607
        %v1732 = vor.u32 %v1731, 8388608
        %v1733 = vsub.s32 0, %v1732
        %v1734 = vadd.s32 %v1729, 1
        %vm1735 = vcmp.gt.s32.totalorder %v1734, 0
        %v1736 = vsel %vm1735, %v1734, 0
        %v1737 = vshrl.u32 %v1736, 5
        %v1738 = vand.u32 %v1736, 31
        %v1739 = vsub.s32 32, %v1738
        %v1740 = vshrl.u32 683565275, %v1739
        %v1741 = vshll.u32 683565275, %v1738
        %v1742 = vshrl.u32 2475754826, %v1739
        %v1743 = vor.u32 %v1741, %v1742
        %v1744 = vshll.u32 2475754826, %v1738
        %v1745 = vshrl.u32 2131351028, %v1739
        %v1746 = vor.u32 %v1744, %v1745
        %v1747 = vshll.u32 2131351028, %v1738
        %v1748 = vshrl.u32 2102212464, %v1739
        %v1749 = vor.u32 %v1747, %v1748
        %v1750 = vshll.u32 2102212464, %v1738
        %v1751 = vshrl.u32 920167782, %v1739
        %v1752 = vor.u32 %v1750, %v1751
        %v1753 = vshll.u32 920167782, %v1738
        %v1754 = vshrl.u32 1326507024, %v1739
        %v1755 = vor.u32 %v1753, %v1754
        %vm1756 = vcmp.lt.s32.totalorder %v1737, 1
        %vm1757 = vcmp.lt.s32.totalorder %v1737, 2
        %vm1758 = vcmp.lt.s32.totalorder %v1737, 3
        %vm1759 = vcmp.lt.s32.totalorder %v1737, 4
        %v1760 = vsel %vm1756, %v1740, %v1743
        %v1761 = vsel %vm1759, %v1749, 2102212464
        %v1762 = vsel %vm1758, %v1746, %v1761
        %v1763 = vsel %vm1757, %v1760, %v1762
        %v1764 = vsel %vm1756, %v1743, %v1746
        %v1765 = vsel %vm1759, %v1752, 920167782
        %v1766 = vsel %vm1758, %v1749, %v1765
        %v1767 = vsel %vm1757, %v1764, %v1766
        %v1768 = vsel %vm1756, %v1746, %v1749
        %v1769 = vsel %vm1759, %v1755, 1326507024
        %v1770 = vsel %vm1758, %v1752, %v1769
        %v1771 = vsel %vm1757, %v1768, %v1770
        %v1772 = vshll.u32 %v1732, 8
        %v1773 = vmul.u32.u64.compose %v1772, %v1771
        %v1774 = vextract.low.u32 %v1773
        %v1775 = vextract.high.u32 %v1773
        %v1776 = vmul.u32.u64.compose %v1772, %v1767
        %v1777 = vextract.low.u32 %v1776
        %v1778 = vextract.high.u32 %v1776
        %v1779 = vmul.u32 %v1772, %v1763
        %v1780 = vadd.s32 %v1775, %v1777
        %vm1781 = vc.u32 %v1775, %v1777
        %v1782 = vadd.s32 %v1778, 1
        %v1783 = vsel %vm1781, %v1782, %v1778
        %v1784 = vadd.s32 %v1779, %v1783
        %v1785 = vadd.s32 %v1784, 536870912
        %v1786 = vshrl.u32 %v1785, 30
        %v1787 = vshll.u32 %v1786, 30
        %v1788 = vsub.s32 %v1784, %v1787
        %vm1789 = vcmp.lt.s32.totalorder %v1788, 0
        %v1790 = vsub.s32 0, %v1788
        %v1791 = vsel %vm1789, %v1790, %v1788
        %v1792 = vclz %v1791
        %v1793 = vsub.s32 %v1792, 2
        %vm1794 = vcmp.gt.s32.totalorder 0, %v1793
        %v1795 = vsel %vm1794, 0, %v1793
        %v1796 = vsub.s32 32, %v1795
        %v1797 = vshll.u32 %v1788, %v1795
        %v1798 = vshrl.u32 %v1780, %v1796
        %v1799 = vor.u32 %v1797, %v1798
        %v1800 = vsub.s32 4294967266, %v1795
        %v1801 = vadd.s32 %v1800, 127
        %v1802 = vshll.u32 %v1801, 23
        %v1803 = vor.u32 4788187, %v1802
        %v1804 = vand.u32 2147483647, %v1803
        %v1806 = vcvt.s32.f32 %v1799
        %v1807 = vmul.f32 %v1806, %v1804
        %v1808 = vxor.u32 %v1807, 2147483648
        %v1809 = vsel %vm1726, %v1808, %v1807
        %v1810 = vsub.s32 4, %v1786
        %v1811 = vsel %vm1726, %v1810, %v1786
        %v1812 = vsel %vm1725, %v472, %v1809
        %v1813 = vsel %vm1725, 0, %v1811
        %v1814 = vcosq.f32.pop %v1812
        %v1815 = vsinq.f32.pop %v1812
        %vm1816 = vweird.f32 %v472
        %v1817 = vadd.s32 %v1813, 3
        %v1818 = vand.u32 %v1817, 3
        %vm1819 = vcmp.lt.s32.totalorder %v1818, 2
        %vm1820 = vcmp.eq.s32.totalorder %v1818, 0
        %v1821 = vxor.u32 %v1815, 2147483648
        %v1822 = vsel %vm1820, %v1814, %v1821
        %vm1823 = vcmp.eq.s32.totalorder %v1818, 2
        %v1824 = vxor.u32 %v1814, 2147483648
        %v1825 = vsel %vm1823, %v1824, %v1815
        %v1826 = vsel %vm1819, %v1822, %v1825
        %v1827 = vsel %vm1816, nan, %v1826
        %v1828 = vand.u32 2147483647, %v473
        %vm1829 = vcmp.le.f32.partialorder %v1828, 0.7853982
        %vm1830 = vcmp.lt.s32.totalorder %v473, 0
        %v1831 = vand.u32 %v473, 2139095040
        %v1832 = vshrl.u32 %v1831, 23
        %v1833 = vsub.s32 %v1832, 127
        %v1834 = vand.u32 2147483647, %v473
        %v1835 = vand.u32 %v1834, 8388607
        %v1836 = vor.u32 %v1835, 8388608
        %v1837 = vsub.s32 0, %v1836
        %v1838 = vadd.s32 %v1833, 1
        %vm1839 = vcmp.gt.s32.totalorder %v1838, 0
        %v1840 = vsel %vm1839, %v1838, 0
        %v1841 = vshrl.u32 %v1840, 5
        %v1842 = vand.u32 %v1840, 31
        %v1843 = vsub.s32 32, %v1842
        %v1844 = vshrl.u32 683565275, %v1843
        %v1845 = vshll.u32 683565275, %v1842
        %v1846 = vshrl.u32 2475754826, %v1843
        %v1847 = vor.u32 %v1845, %v1846
        %v1848 = vshll.u32 2475754826, %v1842
        %v1849 = vshrl.u32 2131351028, %v1843
        %v1850 = vor.u32 %v1848, %v1849
        %v1851 = vshll.u32 2131351028, %v1842
        %v1852 = vshrl.u32 2102212464, %v1843
        %v1853 = vor.u32 %v1851, %v1852
        %v1854 = vshll.u32 2102212464, %v1842
        %v1855 = vshrl.u32 920167782, %v1843
        %v1856 = vor.u32 %v1854, %v1855
        %v1857 = vshll.u32 920167782, %v1842
        %v1858 = vshrl.u32 1326507024, %v1843
        %v1859 = vor.u32 %v1857, %v1858
        %vm1860 = vcmp.lt.s32.totalorder %v1841, 1
        %vm1861 = vcmp.lt.s32.totalorder %v1841, 2
        %vm1862 = vcmp.lt.s32.totalorder %v1841, 3
        %vm1863 = vcmp.lt.s32.totalorder %v1841, 4
        %v1864 = vsel %vm1860, %v1844, %v1847
        %v1865 = vsel %vm1863, %v1853, 2102212464
        %v1866 = vsel %vm1862, %v1850, %v1865
        %v1867 = vsel %vm1861, %v1864, %v1866
        %v1868 = vsel %vm1860, %v1847, %v1850
        %v1869 = vsel %vm1863, %v1856, 920167782
        %v1870 = vsel %vm1862, %v1853, %v1869
        %v1871 = vsel %vm1861, %v1868, %v1870
        %v1872 = vsel %vm1860, %v1850, %v1853
        %v1873 = vsel %vm1863, %v1859, 1326507024
        %v1874 = vsel %vm1862, %v1856, %v1873
        %v1875 = vsel %vm1861, %v1872, %v1874
        %v1876 = vshll.u32 %v1836, 8
        %v1877 = vmul.u32.u64.compose %v1876, %v1875
        %v1878 = vextract.low.u32 %v1877
        %v1879 = vextract.high.u32 %v1877
        %v1880 = vmul.u32.u64.compose %v1876, %v1871
        %v1881 = vextract.low.u32 %v1880
        %v1882 = vextract.high.u32 %v1880
        %v1883 = vmul.u32 %v1876, %v1867
        %v1884 = vadd.s32 %v1879, %v1881
        %vm1885 = vc.u32 %v1879, %v1881
        %v1886 = vadd.s32 %v1882, 1
        %v1887 = vsel %vm1885, %v1886, %v1882
        %v1888 = vadd.s32 %v1883, %v1887
        %v1889 = vadd.s32 %v1888, 536870912
        %v1890 = vshrl.u32 %v1889, 30
        %v1891 = vshll.u32 %v1890, 30
        %v1892 = vsub.s32 %v1888, %v1891
        %vm1893 = vcmp.lt.s32.totalorder %v1892, 0
        %v1894 = vsub.s32 0, %v1892
        %v1895 = vsel %vm1893, %v1894, %v1892
        %v1896 = vclz %v1895
        %v1897 = vsub.s32 %v1896, 2
        %vm1898 = vcmp.gt.s32.totalorder 0, %v1897
        %v1899 = vsel %vm1898, 0, %v1897
        %v1900 = vsub.s32 32, %v1899
        %v1901 = vshll.u32 %v1892, %v1899
        %v1902 = vshrl.u32 %v1884, %v1900
        %v1903 = vor.u32 %v1901, %v1902
        %v1904 = vsub.s32 4294967266, %v1899
        %v1905 = vadd.s32 %v1904, 127
        %v1906 = vshll.u32 %v1905, 23
        %v1907 = vor.u32 4788187, %v1906
        %v1908 = vand.u32 2147483647, %v1907
        %v1910 = vcvt.s32.f32 %v1903
        %v1911 = vmul.f32 %v1910, %v1908
        %v1912 = vxor.u32 %v1911, 2147483648
        %v1913 = vsel %vm1830, %v1912, %v1911
        %v1914 = vsub.s32 4, %v1890
        %v1915 = vsel %vm1830, %v1914, %v1890
        %v1916 = vsel %vm1829, %v473, %v1913
        %v1917 = vsel %vm1829, 0, %v1915
        %v1918 = vcosq.f32.pop %v1916
        %v1919 = vsinq.f32.pop %v1916
        %vm1920 = vweird.f32 %v473
        %v1921 = vadd.s32 %v1917, 3
        %v1922 = vand.u32 %v1921, 3
        %vm1923 = vcmp.lt.s32.totalorder %v1922, 2
        %vm1924 = vcmp.eq.s32.totalorder %v1922, 0
        %v1925 = vxor.u32 %v1919, 2147483648
        %v1926 = vsel %vm1924, %v1918, %v1925
        %vm1927 = vcmp.eq.s32.totalorder %v1922, 2
        %v1928 = vxor.u32 %v1918, 2147483648
        %v1929 = vsel %vm1927, %v1928, %v1919
        %v1930 = vsel %vm1923, %v1926, %v1929
        %v1931 = vsel %vm1920, nan, %v1930
        %v1932 = vand.u32 2147483647, %v474
        %vm1933 = vcmp.le.f32.partialorder %v1932, 0.7853982
        %vm1934 = vcmp.lt.s32.totalorder %v474, 0
        %v1935 = vand.u32 %v474, 2139095040
        %v1936 = vshrl.u32 %v1935, 23
        %v1937 = vsub.s32 %v1936, 127
        %v1938 = vand.u32 2147483647, %v474
        %v1939 = vand.u32 %v1938, 8388607
        %v1940 = vor.u32 %v1939, 8388608
        %v1941 = vsub.s32 0, %v1940
        %v1942 = vadd.s32 %v1937, 1
        %vm1943 = vcmp.gt.s32.totalorder %v1942, 0
        %v1944 = vsel %vm1943, %v1942, 0
        %v1945 = vshrl.u32 %v1944, 5
        %v1946 = vand.u32 %v1944, 31
        %v1947 = vsub.s32 32, %v1946
        %v1948 = vshrl.u32 683565275, %v1947
        %v1949 = vshll.u32 683565275, %v1946
        %v1950 = vshrl.u32 2475754826, %v1947
        %v1951 = vor.u32 %v1949, %v1950
        %v1952 = vshll.u32 2475754826, %v1946
        %v1953 = vshrl.u32 2131351028, %v1947
        %v1954 = vor.u32 %v1952, %v1953
        %v1955 = vshll.u32 2131351028, %v1946
        %v1956 = vshrl.u32 2102212464, %v1947
        %v1957 = vor.u32 %v1955, %v1956
        %v1958 = vshll.u32 2102212464, %v1946
        %v1959 = vshrl.u32 920167782, %v1947
        %v1960 = vor.u32 %v1958, %v1959
        %v1961 = vshll.u32 920167782, %v1946
        %v1962 = vshrl.u32 1326507024, %v1947
        %v1963 = vor.u32 %v1961, %v1962
        %vm1964 = vcmp.lt.s32.totalorder %v1945, 1
        %vm1965 = vcmp.lt.s32.totalorder %v1945, 2
        %vm1966 = vcmp.lt.s32.totalorder %v1945, 3
        %vm1967 = vcmp.lt.s32.totalorder %v1945, 4
        %v1968 = vsel %vm1964, %v1948, %v1951
        %v1969 = vsel %vm1967, %v1957, 2102212464
        %v1970 = vsel %vm1966, %v1954, %v1969
        %v1971 = vsel %vm1965, %v1968, %v1970
        %v1972 = vsel %vm1964, %v1951, %v1954
        %v1973 = vsel %vm1967, %v1960, 920167782
        %v1974 = vsel %vm1966, %v1957, %v1973
        %v1975 = vsel %vm1965, %v1972, %v1974
        %v1976 = vsel %vm1964, %v1954, %v1957
        %v1977 = vsel %vm1967, %v1963, 1326507024
        %v1978 = vsel %vm1966, %v1960, %v1977
        %v1979 = vsel %vm1965, %v1976, %v1978
        %v1980 = vshll.u32 %v1940, 8
        %v1981 = vmul.u32.u64.compose %v1980, %v1979
        %v1982 = vextract.low.u32 %v1981
        %v1983 = vextract.high.u32 %v1981
        %v1984 = vmul.u32.u64.compose %v1980, %v1975
        %v1985 = vextract.low.u32 %v1984
        %v1986 = vextract.high.u32 %v1984
        %v1987 = vmul.u32 %v1980, %v1971
        %v1988 = vadd.s32 %v1983, %v1985
        %vm1989 = vc.u32 %v1983, %v1985
        %v1990 = vadd.s32 %v1986, 1
        %v1991 = vsel %vm1989, %v1990, %v1986
        %v1992 = vadd.s32 %v1987, %v1991
        %v1993 = vadd.s32 %v1992, 536870912
        %v1994 = vshrl.u32 %v1993, 30
        %v1995 = vshll.u32 %v1994, 30
        %v1996 = vsub.s32 %v1992, %v1995
        %vm1997 = vcmp.lt.s32.totalorder %v1996, 0
        %v1998 = vsub.s32 0, %v1996
        %v1999 = vsel %vm1997, %v1998, %v1996
        %v2000 = vclz %v1999
        %v2001 = vsub.s32 %v2000, 2
        %vm2002 = vcmp.gt.s32.totalorder 0, %v2001
        %v2003 = vsel %vm2002, 0, %v2001
        %v2004 = vsub.s32 32, %v2003
        %v2005 = vshll.u32 %v1996, %v2003
        %v2006 = vshrl.u32 %v1988, %v2004
        %v2007 = vor.u32 %v2005, %v2006
        %v2008 = vsub.s32 4294967266, %v2003
        %v2009 = vadd.s32 %v2008, 127
        %v2010 = vshll.u32 %v2009, 23
        %v2011 = vor.u32 4788187, %v2010
        %v2012 = vand.u32 2147483647, %v2011
        %v2014 = vcvt.s32.f32 %v2007
        %v2015 = vmul.f32 %v2014, %v2012
        %v2016 = vxor.u32 %v2015, 2147483648
        %v2017 = vsel %vm1934, %v2016, %v2015
        %v2018 = vsub.s32 4, %v1994
        %v2019 = vsel %vm1934, %v2018, %v1994
        %v2020 = vsel %vm1933, %v474, %v2017
        %v2021 = vsel %vm1933, 0, %v2019
        %v2022 = vcosq.f32.pop %v2020
        %v2023 = vsinq.f32.pop %v2020
        %vm2024 = vweird.f32 %v474
        %v2025 = vadd.s32 %v2021, 3
        %v2026 = vand.u32 %v2025, 3
        %vm2027 = vcmp.lt.s32.totalorder %v2026, 2
        %vm2028 = vcmp.eq.s32.totalorder %v2026, 0
        %v2029 = vxor.u32 %v2023, 2147483648
        %v2030 = vsel %vm2028, %v2022, %v2029
        %vm2031 = vcmp.eq.s32.totalorder %v2026, 2
        %v2032 = vxor.u32 %v2022, 2147483648
        %v2033 = vsel %vm2031, %v2032, %v2023
        %v2034 = vsel %vm2027, %v2030, %v2033
        %v2035 = vsel %vm2024, nan, %v2034
        %v2036 = vand.u32 2147483647, %v475
        %vm2037 = vcmp.le.f32.partialorder %v2036, 0.7853982
        %vm2038 = vcmp.lt.s32.totalorder %v475, 0
        %v2039 = vand.u32 %v475, 2139095040
        %v2040 = vshrl.u32 %v2039, 23
        %v2041 = vsub.s32 %v2040, 127
        %v2042 = vand.u32 2147483647, %v475
        %v2043 = vand.u32 %v2042, 8388607
        %v2044 = vor.u32 %v2043, 8388608
        %v2045 = vsub.s32 0, %v2044
        %v2046 = vadd.s32 %v2041, 1
        %vm2047 = vcmp.gt.s32.totalorder %v2046, 0
        %v2048 = vsel %vm2047, %v2046, 0
        %v2049 = vshrl.u32 %v2048, 5
        %v2050 = vand.u32 %v2048, 31
        %v2051 = vsub.s32 32, %v2050
        %v2052 = vshrl.u32 683565275, %v2051
        %v2053 = vshll.u32 683565275, %v2050
        %v2054 = vshrl.u32 2475754826, %v2051
        %v2055 = vor.u32 %v2053, %v2054
        %v2056 = vshll.u32 2475754826, %v2050
        %v2057 = vshrl.u32 2131351028, %v2051
        %v2058 = vor.u32 %v2056, %v2057
        %v2059 = vshll.u32 2131351028, %v2050
        %v2060 = vshrl.u32 2102212464, %v2051
        %v2061 = vor.u32 %v2059, %v2060
        %v2062 = vshll.u32 2102212464, %v2050
        %v2063 = vshrl.u32 920167782, %v2051
        %v2064 = vor.u32 %v2062, %v2063
        %v2065 = vshll.u32 920167782, %v2050
        %v2066 = vshrl.u32 1326507024, %v2051
        %v2067 = vor.u32 %v2065, %v2066
        %vm2068 = vcmp.lt.s32.totalorder %v2049, 1
        %vm2069 = vcmp.lt.s32.totalorder %v2049, 2
        %vm2070 = vcmp.lt.s32.totalorder %v2049, 3
        %vm2071 = vcmp.lt.s32.totalorder %v2049, 4
        %v2072 = vsel %vm2068, %v2052, %v2055
        %v2073 = vsel %vm2071, %v2061, 2102212464
        %v2074 = vsel %vm2070, %v2058, %v2073
        %v2075 = vsel %vm2069, %v2072, %v2074
        %v2076 = vsel %vm2068, %v2055, %v2058
        %v2077 = vsel %vm2071, %v2064, 920167782
        %v2078 = vsel %vm2070, %v2061, %v2077
        %v2079 = vsel %vm2069, %v2076, %v2078
        %v2080 = vsel %vm2068, %v2058, %v2061
        %v2081 = vsel %vm2071, %v2067, 1326507024
        %v2082 = vsel %vm2070, %v2064, %v2081
        %v2083 = vsel %vm2069, %v2080, %v2082
        %v2084 = vshll.u32 %v2044, 8
        %v2085 = vmul.u32.u64.compose %v2084, %v2083
        %v2086 = vextract.low.u32 %v2085
        %v2087 = vextract.high.u32 %v2085
        %v2088 = vmul.u32.u64.compose %v2084, %v2079
        %v2089 = vextract.low.u32 %v2088
        %v2090 = vextract.high.u32 %v2088
        %v2091 = vmul.u32 %v2084, %v2075
        %v2092 = vadd.s32 %v2087, %v2089
        %vm2093 = vc.u32 %v2087, %v2089
        %v2094 = vadd.s32 %v2090, 1
        %v2095 = vsel %vm2093, %v2094, %v2090
        %v2096 = vadd.s32 %v2091, %v2095
        %v2097 = vadd.s32 %v2096, 536870912
        %v2098 = vshrl.u32 %v2097, 30
        %v2099 = vshll.u32 %v2098, 30
        %v2100 = vsub.s32 %v2096, %v2099
        %vm2101 = vcmp.lt.s32.totalorder %v2100, 0
        %v2102 = vsub.s32 0, %v2100
        %v2103 = vsel %vm2101, %v2102, %v2100
        %v2104 = vclz %v2103
        %v2105 = vsub.s32 %v2104, 2
        %vm2106 = vcmp.gt.s32.totalorder 0, %v2105
        %v2107 = vsel %vm2106, 0, %v2105
        %v2108 = vsub.s32 32, %v2107
        %v2109 = vshll.u32 %v2100, %v2107
        %v2110 = vshrl.u32 %v2092, %v2108
        %v2111 = vor.u32 %v2109, %v2110
        %v2112 = vsub.s32 4294967266, %v2107
        %v2113 = vadd.s32 %v2112, 127
        %v2114 = vshll.u32 %v2113, 23
        %v2115 = vor.u32 4788187, %v2114
        %v2116 = vand.u32 2147483647, %v2115
        %v2118 = vcvt.s32.f32 %v2111
        %v2119 = vmul.f32 %v2118, %v2116
        %v2120 = vxor.u32 %v2119, 2147483648
        %v2121 = vsel %vm2038, %v2120, %v2119
        %v2122 = vsub.s32 4, %v2098
        %v2123 = vsel %vm2038, %v2122, %v2098
        %v2124 = vsel %vm2037, %v475, %v2121
        %v2125 = vsel %vm2037, 0, %v2123
        %v2126 = vcosq.f32.pop %v2124
        %v2127 = vsinq.f32.pop %v2124
        %vm2128 = vweird.f32 %v475
        %v2129 = vadd.s32 %v2125, 3
        %v2130 = vand.u32 %v2129, 3
        %vm2131 = vcmp.lt.s32.totalorder %v2130, 2
        %vm2132 = vcmp.eq.s32.totalorder %v2130, 0
        %v2133 = vxor.u32 %v2127, 2147483648
        %v2134 = vsel %vm2132, %v2126, %v2133
        %vm2135 = vcmp.eq.s32.totalorder %v2130, 2
        %v2136 = vxor.u32 %v2126, 2147483648
        %v2137 = vsel %vm2135, %v2136, %v2127
        %v2138 = vsel %vm2131, %v2134, %v2137
        %v2139 = vsel %vm2128, nan, %v2138
        %2140 = vst [vmem:[%s164] sm:$0xff] %v579
        %2141 = vst [vmem:[%s164 + $0x8] sm:$0xff] %v683
        %2142 = vst [vmem:[%s164 + $0x10] sm:$0xff] %v787
        %2143 = vst [vmem:[%s164 + $0x18] sm:$0xff] %v891
        %2144 = vst [vmem:[%s164 + $0x20] sm:$0xff] %v995
        %2145 = vst [vmem:[%s164 + $0x28] sm:$0xff] %v1099
        %2146 = vst [vmem:[%s164 + $0x30] sm:$0xff] %v1203
        %2147 = vst [vmem:[%s164 + $0x38] sm:$0xff] %v1307
        %2148 = vst [vmem:[%s164 + $0x40] sm:$0xff] %v1411
        %2149 = vst [vmem:[%s164 + $0x48] sm:$0xff] %v1515
        %2150 = vst [vmem:[%s164 + $0x50] sm:$0xff] %v1619
        %2151 = vst [vmem:[%s164 + $0x58] sm:$0xff] %v1723
        %2152 = vst [vmem:[%s164 + $0x60] sm:$0xff] %v1827
        %2153 = vst [vmem:[%s164 + $0x68] sm:$0xff] %v1931
        %2154 = vst [vmem:[%s164 + $0x70] sm:$0xff] %v2035
        %2155 = vst [vmem:[%s164 + $0x78] sm:$0xff] %v2139
        %s2156 = sand.u32 %s93, 1
        %s2157 = scalar_lea.sflag [#allocation3], %s2156
        %s2158 = sand.u32 %s93, 1
        %s2159 = smul.addr %s2158, 128
        %s2160 = scalar_lea.vmem [#allocation2], %s2159
        // Predicated region
        $region33: #{tpu_custom_call.1} parent=31 // pred_check
          %p2161 = pneg %p103
        $region34: #{tpu_custom_call.1} parent=31 // pred_check_branch
          %2163 = sbr.rel (%p2161) target = $region36
        $region35: #{tpu_custom_call.1} parent=31 // pred_region
          %s2164 = smul.u32 4, %s17
          %s2166 = ssub.s32 2048, 2048
          %2167 = vsyncadd %s2157, %s2166
          %s2168 = smul.addr %s2164, 128
          %s2169 = scalar_lea.hbm %s3, %s2168
          %s2170 = sshll.u32 %s2160, 4
          %s2171 = int_to_ptr.vmem [resolvable:$true] %s2170
          %2176 = dma.vmem_to_hbm [thread:$0]  %s2171, 2048, %s2169, %s2157, 512, 2048, 32
        $region36: #{tpu_custom_call.1} parent=31 // pred_fallthru
          _
      $region32: #{tpu_custom_call.1} parent=5 // pred_fallthru
        _
      %p2177 = scmp.le.s32.totalorder 2, %s12
      // Predicated region
      $region37: #{tpu_custom_call.1} parent=5 // pred_check
        %p2178 = pneg %p2177
      $region38: #{tpu_custom_call.1} parent=5 // pred_check_branch
        %2180 = sbr.rel (%p2178) target = $region40
      $region39: #{tpu_custom_call.1} parent=5 // pred_region
        %s2181 = ssub.s32 %s12, 2
        // Predicated region
        $region41: #{tpu_custom_call.1} parent=39 // pred_check
          %p2182 = pneg %p109
        $region42: #{tpu_custom_call.1} parent=39 // pred_check_branch
          %2184 = sbr.rel (%p2182) target = $region44
        $region43: #{tpu_custom_call.1} parent=39 // pred_region
          %s2185 = sand.u32 %s94, 1
          %s2186 = scalar_lea.sflag [#allocation3], %s2185
          %s2187 = sand.u32 %s94, 1
          %s2188 = smul.addr %s2187, 128
          %s2189 = scalar_lea.vmem [#allocation2], %s2188
          %2190 = dma.done %s2186, 2048
        $region44: #{tpu_custom_call.1} parent=39 // pred_fallthru
          _
      $region40: #{tpu_custom_call.1} parent=5 // pred_fallthru
        _
    $region6: #{tpu_custom_call.1} parent=1 // loop_footer
      %s16 = sadd.s32 1, %s12
    $region7: #{tpu_custom_call.1} parent=1 // loop_footer_branch
      %11 = sbr.rel target = $region3
    $region8: #{tpu_custom_call.1} parent=1 // loop_exit
      _
    %2191 = vsyncpa [#allocation3], 1
    %s2192 = scalar_lea.sflag [#allocation3], 1
    %2193 = vsyncpa %s2192, 1

</llo_original>
